<compile_context>
chip_gen: v7x
topology: tpu7x:2x2x1
jax: 0.10.0
libtpu: 0.0.40
codegen_flags: <defaults>
</compile_context>

<pallas_src>
import jax
import jax.numpy as jnp
from jax.experimental import pallas as pl
from jax.experimental.pallas import tpu as pltpu

# ---- configuration (small, consistent with the module) ----
NS = 16                 # multiplicity of 0e in irreps_feature
NV = 8                  # multiplicity of 1e in irreps_feature (dead branch, see note)
NA = 16                 # node-attr scalar channels (node_attr_dim=None -> == NS)
NU = 16                 # FFN scalar output channels
FEAT_DIM = NS + 3 * NV  # 40
N = 16                  # number of nodes (demo)
NUM_GRAPHS = 2          # graphs in the batch (for the scatter-add / mean / std stage)
TILE_N = 128            # lane-axis node tile (multiple of 128; use 512-1024 at scale)


def head_kernel(s_ref, a_ref, ri_ref, rj_ref, ra_ref,
                w1t_ref, w2t_ref, g_ref, bias_ref, l2t_ref, out_ref):
    # packed biases: col 0 = b1, col 1 = c1_eff = L1^T b2 + c1, col 2 = c2
    b1 = bias_ref[:, 0:1]        # (NU, 1)
    c1e = bias_ref[:, 1:2]       # (NU, 1)
    c2 = bias_ref[0:1, 2:3]      # (1, 1)

    # Rebuild the tensor-product operands in VMEM from the raw 16-channel node tiles
    # (streams 128 B/node from HBM instead of ~2 KiB/node):
    #   kron_t[(i*NA+j), n] = s[n,i] * a[n,j]   ;   a_rep_t[(j*NU+u), n] = a[n,j]
    si = jnp.dot(ri_ref[...], s_ref[...], preferred_element_type=jnp.float32)   # (NS*NA, T)
    aj = jnp.dot(rj_ref[...], a_ref[...], preferred_element_type=jnp.float32)   # (NS*NA, T)
    kron = si * aj                                                               # (NS*NA, T)
    a_rep = jnp.dot(ra_ref[...], a_ref[...], preferred_element_type=jnp.float32)  # (NA*NU, T)

    # fctp_1 (scalar path) + SwishGate(SiLU): one K=256 MXU matmul, nodes on lanes.
    h_s = jnp.dot(w1t_ref[...], kron, preferred_element_type=jnp.float32) + b1  # (NU, T)
    z = jax.nn.silu(h_s)

    # fctp_2 folded with output_network LinearRS-1:
    #   m  = (W2^T z) * a_rep                  (NA*NU, T)
    #   h1 = G m + c1_eff   with  G = L1^T S^T (selection-sum + L1 in one matmul)
    m = jnp.dot(w2t_ref[...], z, preferred_element_type=jnp.float32) * a_rep
    h1 = jnp.dot(g_ref[...], m, preferred_element_type=jnp.float32) + c1e        # (NU, T)
    h2 = jax.nn.silu(h1)

    # final LinearRS -> '1x0e' — lane-dense (1, T) energy row (L2^T zero-padded to 8
    # rows for a full sublane tile; only row 0 is meaningful).
    out = jnp.dot(l2t_ref[...], h2, preferred_element_type=jnp.float32)          # (8, T)
    out_ref[...] = (out[0:1, :] + c2).astype(out_ref.dtype)


def equivariant_head_via_tp(features, attrs, params, *, tile_n=TILE_N,
                            stream_dtype=jnp.float32):
    """features: [N, FEAT_DIM] f32, attrs: [N, NA] f32  ->  per-node energy [N, 1] f32.

    stream_dtype=jnp.bfloat16 halves streamed HBM bytes on v6e/v7x (f32 MXU accumulate
    is kept); the default f32 path guarantees the 2e-3 tolerance of the self-test.
    """
    n = features.shape[0]
    num_tiles = pl.cdiv(n, tile_n)
    n_pad = num_tiles * tile_n

    # Only the scalar (0e) feature columns are live for this scalar-only head — the 1e
    # columns are never DMA'd.  Padded lanes are zero and sliced off after the kernel.
    s = features[:, :NS]
    a = attrs
    sT = jnp.pad(s, ((0, n_pad - n), (0, 0))).T.astype(stream_dtype)   # (NS, n_pad)
    aT = jnp.pad(a, ((0, n_pad - n), (0, 0))).T.astype(stream_dtype)   # (NA, n_pad)

    # Constant 0/1 replicate matrices (tiny, resident in VMEM, fetched once).
    r_i = jnp.repeat(jnp.eye(NS, dtype=stream_dtype), NA, axis=0)      # (NS*NA, NS)
    r_j = jnp.tile(jnp.eye(NA, dtype=stream_dtype), (NS, 1))           # (NS*NA, NA)
    r_a = jnp.repeat(jnp.eye(NA, dtype=stream_dtype), NU, axis=0)      # (NA*NU, NA)

    # Fold e3nn tensor-product weights into plain matmul operands (one-time prep).
    w1t = params["W1"].reshape(NS * NA, NU).T                          # (NU, NS*NA)
    w2t = params["W2"].reshape(NU, NA * NU).T                          # (NA*NU, NU)
    sel = jnp.tile(jnp.eye(NU, dtype=jnp.float32), (NA, 1))            # (NA*NU, NU)
    g = params["L1"].T @ sel.T                                         # (NU, NA*NU)
    c1_eff = params["L1"].T @ params["b2"] + params["c1"]              # fold b2 through L1
    bias_pack = jnp.stack(
        [params["b1"], c1_eff, jnp.full((NU,), params["c2"][0], jnp.float32)],
        axis=1)                                                        # (NU, 3)
    l2t_pad = jnp.zeros((8, NU), jnp.float32).at[0].set(params["L2"][:, 0])  # (8, NU)

    full = lambda i: (0, 0)
    node_tiled = lambda i: (0, i)

    out_row = pl.pallas_call(
        head_kernel,
        out_shape=jax.ShapeDtypeStruct((1, n_pad), jnp.float32),
        grid_spec=pl.GridSpec(
            grid=(num_tiles,),
            in_specs=[
                pl.BlockSpec((NS, tile_n), node_tiled),   # s^T  (streamed per tile)
                pl.BlockSpec((NA, tile_n), node_tiled),   # a^T  (streamed per tile)
                pl.BlockSpec((NS * NA, NS), full),        # R_i  (resident constant)
                pl.BlockSpec((NS * NA, NA), full),        # R_j  (resident constant)
                pl.BlockSpec((NA * NU, NA), full),        # R_a  (resident constant)
                pl.BlockSpec((NU, NS * NA), full),        # W1^T
                pl.BlockSpec((NA * NU, NU), full),        # W2^T
                pl.BlockSpec((NU, NA * NU), full),        # G = L1^T S^T
                pl.BlockSpec((NU, 3), full),              # packed biases
                pl.BlockSpec((8, NU), full),              # L2^T (zero-padded)
            ],
            out_specs=pl.BlockSpec((1, tile_n), node_tiled),   # lane-dense energy row
        ),
        compiler_params=pltpu.CompilerParams(dimension_semantics=("parallel",)),
    )(sT, aT, r_i, r_j, r_a, w1t, w2t, g, bias_pack, l2t_pad)

    return out_row[0, :n].reshape(n, 1)


def energy_force_head_forward(features, attrs, batch, params, mean=0.0, std=1.0,
                              num_graphs=NUM_GRAPHS):
    """EnergyForceHead.forward (energy path): per-node head -> scatter_add -> *std+mean."""
    node_energy = equivariant_head_via_tp(features, attrs, params)              # [N, 1]
    pred_energy = jax.ops.segment_sum(node_energy[:, 0], batch,
                                      num_segments=num_graphs) * std + mean     # [B]
    # TODO(synk): pred_forces (= -d(pred_energy)/d(pos)) needs autograd through the full
    # backbone w.r.t. positions, which never enter this head; not representable here.
    return node_energy, pred_energy


def reference(features, attrs, params):
    s = features[:, :NS]
    h_s = jnp.einsum("ni,nj,iju->nu", s, attrs, params["W1"]) + params["b1"]
    z_s = jax.nn.silu(h_s)
    y = jnp.einsum("ni,nj,iju->nu", z_s, attrs, params["W2"]) + params["b2"]
    h1 = y @ params["L1"] + params["c1"]
    return jax.nn.silu(h1) @ params["L2"] + params["c2"]


def init_params(key):
    ks = jax.random.split(key, 8)
    # rescale (1/sqrt(fan_in)) factors from equiformer's TensorProductRescale / LinearRS
    # are folded directly into these synthetic weights.
    return {
        "W1": jax.random.normal(ks[0], (NS, NA, NU), jnp.float32) / jnp.sqrt(NS * NA),
        "b1": jax.random.uniform(ks[1], (NU,), jnp.float32, -0.1, 0.1),
        "W2": jax.random.normal(ks[2], (NU, NA, NU), jnp.float32) / jnp.sqrt(NU * NA),
        "b2": jax.random.uniform(ks[3], (NU,), jnp.float32, -0.1, 0.1),
        "L1": jax.random.normal(ks[4], (NU, NU), jnp.float32) / jnp.sqrt(NU),
        "c1": jax.random.uniform(ks[5], (NU,), jnp.float32, -0.1, 0.1),
        "L2": jax.random.normal(ks[6], (NU, 1), jnp.float32) / jnp.sqrt(NU),
        "c2": jax.random.uniform(ks[7], (1,), jnp.float32, -0.1, 0.1),
    }


if __name__ == "__main__":
    key = jax.random.PRNGKey(0)
    k_feat, k_attr, k_par = jax.random.split(key, 3)
    params = init_params(k_par)

    # --- primary small case consistent with the module: 16 nodes, 2 graphs ---
    node_vec = jax.random.normal(k_feat, (N, FEAT_DIM), jnp.float32)
    node_embedding = jax.random.normal(k_attr, (N, NA), jnp.float32)
    batch = jnp.repeat(jnp.arange(NUM_GRAPHS, dtype=jnp.int32), N // NUM_GRAPHS)

    node_energy, pred_energy = energy_force_head_forward(
        node_vec, node_embedding, batch, params, mean=0.0, std=1.0)
    node_energy = jax.block_until_ready(node_energy)
    pred_energy = jax.block_until_ready(pred_energy)

    ref_node = jax.block_until_ready(reference(node_vec, node_embedding, params))
    ref_energy = jax.ops.segment_sum(ref_node[:, 0], batch, num_segments=NUM_GRAPHS)

    assert node_energy.shape == (N, 1)
    assert pred_energy.shape == (NUM_GRAPHS,)
    assert jnp.allclose(node_energy, ref_node, rtol=2e-3, atol=2e-3), (
        f"max abs diff {jnp.max(jnp.abs(node_energy - ref_node))}")
    assert jnp.allclose(pred_energy, ref_energy, rtol=2e-3, atol=2e-3), (
        f"max abs diff {jnp.max(jnp.abs(pred_energy - ref_energy))}")

    # --- second check: multi-tile grid (pl.cdiv + lane-padding path, 3 x 128 lanes,
    #     node-tile axis parallel across v7x's two TensorCores) ---
    n2 = 320
    nv2 = jax.random.normal(jax.random.PRNGKey(1), (n2, FEAT_DIM), jnp.float32)
    ne2 = jax.random.normal(jax.random.PRNGKey(2), (n2, NA), jnp.float32)
    out2 = jax.block_until_ready(equivariant_head_via_tp(nv2, ne2, params))
    ref2 = reference(nv2, ne2, params)
    assert out2.shape == (n2, 1)
    assert jnp.allclose(out2, ref2, rtol=2e-3, atol=2e-3), (
        f"max abs diff {jnp.max(jnp.abs(out2 - ref2))}")

    print("KERNEL_OK")
</pallas_src>

<mosaic_0001>
module attributes {stable_mosaic.version = 11 : i64} {
  func.func @head_kernel(%arg0: i32, %arg1: memref<16x128xf32, #tpu.memory_space<vmem>>, %arg2: memref<16x128xf32, #tpu.memory_space<vmem>>, %arg3: memref<256x16xf32, #tpu.memory_space<vmem>>, %arg4: memref<256x16xf32, #tpu.memory_space<vmem>>, %arg5: memref<256x16xf32, #tpu.memory_space<vmem>>, %arg6: memref<16x256xf32, #tpu.memory_space<vmem>>, %arg7: memref<256x16xf32, #tpu.memory_space<vmem>>, %arg8: memref<16x256xf32, #tpu.memory_space<vmem>>, %arg9: memref<16x3xf32, #tpu.memory_space<vmem>>, %arg10: memref<8x16xf32, #tpu.memory_space<vmem>>, %arg11: memref<1x128xf32, #tpu.memory_space<vmem>>) attributes {dimension_semantics = [#tpu.dimension_semantics<parallel>], iteration_bounds = array<i64: 1>, scalar_prefetch = 0 : i64, scratch_operands = 0 : i64, tpu.core_type = #tpu.core_type<tc>, window_params = [{transform_indices = @transform_0, window_bounds = array<i64: 16, 128>}, {transform_indices = @transform_1, window_bounds = array<i64: 16, 128>}, {pipeline_mode = #tpu.pipeline_mode<synchronous>, transform_indices = @transform_2, window_bounds = array<i64: 256, 16>}, {pipeline_mode = #tpu.pipeline_mode<synchronous>, transform_indices = @transform_3, window_bounds = array<i64: 256, 16>}, {pipeline_mode = #tpu.pipeline_mode<synchronous>, transform_indices = @transform_4, window_bounds = array<i64: 256, 16>}, {pipeline_mode = #tpu.pipeline_mode<synchronous>, transform_indices = @transform_5, window_bounds = array<i64: 16, 256>}, {pipeline_mode = #tpu.pipeline_mode<synchronous>, transform_indices = @transform_6, window_bounds = array<i64: 256, 16>}, {pipeline_mode = #tpu.pipeline_mode<synchronous>, transform_indices = @transform_7, window_bounds = array<i64: 16, 256>}, {pipeline_mode = #tpu.pipeline_mode<synchronous>, transform_indices = @transform_8, window_bounds = array<i64: 16, 3>}, {pipeline_mode = #tpu.pipeline_mode<synchronous>, transform_indices = @transform_9, window_bounds = array<i64: 8, 16>}, {transform_indices = @transform_10, window_bounds = array<i64: 1, 128>}]} {
    %c0 = arith.constant 0 : index
    %c0_0 = arith.constant 0 : index
    %0 = vector.load %arg9[%c0, %c0_0] : memref<16x3xf32, #tpu.memory_space<vmem>>, vector<16x1xf32>
    %c0_1 = arith.constant 0 : index
    %c1 = arith.constant 1 : index
    %1 = vector.load %arg9[%c0_1, %c1] : memref<16x3xf32, #tpu.memory_space<vmem>>, vector<16x1xf32>
    %c0_2 = arith.constant 0 : index
    %c2 = arith.constant 2 : index
    %2 = vector.load %arg9[%c0_2, %c2] : memref<16x3xf32, #tpu.memory_space<vmem>>, vector<1x1xf32>
    %c0_3 = arith.constant 0 : index
    %c0_4 = arith.constant 0 : index
    %3 = vector.load %arg3[%c0_3, %c0_4] : memref<256x16xf32, #tpu.memory_space<vmem>>, vector<256x16xf32>
    %c0_5 = arith.constant 0 : index
    %c0_6 = arith.constant 0 : index
    %4 = vector.load %arg1[%c0_5, %c0_6] : memref<16x128xf32, #tpu.memory_space<vmem>>, vector<16x128xf32>
    %cst = arith.constant dense<0.000000e+00> : vector<256x128xf32>
    %5 = tpu.matmul %3, %4, %cst {dimension_numbers = #tpu.dot_dimension_numbers<[1], [0], [0], [1], [0, 0, 1, 1], [], []>} : vector<256x16xf32>, vector<16x128xf32>, vector<256x128xf32> -> vector<256x128xf32>
    %c0_7 = arith.constant 0 : index
    %c0_8 = arith.constant 0 : index
    %6 = vector.load %arg4[%c0_7, %c0_8] : memref<256x16xf32, #tpu.memory_space<vmem>>, vector<256x16xf32>
    %c0_9 = arith.constant 0 : index
    %c0_10 = arith.constant 0 : index
    %7 = vector.load %arg2[%c0_9, %c0_10] : memref<16x128xf32, #tpu.memory_space<vmem>>, vector<16x128xf32>
    %cst_11 = arith.constant dense<0.000000e+00> : vector<256x128xf32>
    %8 = tpu.matmul %6, %7, %cst_11 {dimension_numbers = #tpu.dot_dimension_numbers<[1], [0], [0], [1], [0, 0, 1, 1], [], []>} : vector<256x16xf32>, vector<16x128xf32>, vector<256x128xf32> -> vector<256x128xf32>
    %9 = arith.mulf %5, %8 : vector<256x128xf32>
    %c0_12 = arith.constant 0 : index
    %c0_13 = arith.constant 0 : index
    %10 = vector.load %arg5[%c0_12, %c0_13] : memref<256x16xf32, #tpu.memory_space<vmem>>, vector<256x16xf32>
    %c0_14 = arith.constant 0 : index
    %c0_15 = arith.constant 0 : index
    %11 = vector.load %arg2[%c0_14, %c0_15] : memref<16x128xf32, #tpu.memory_space<vmem>>, vector<16x128xf32>
    %cst_16 = arith.constant dense<0.000000e+00> : vector<256x128xf32>
    %12 = tpu.matmul %10, %11, %cst_16 {dimension_numbers = #tpu.dot_dimension_numbers<[1], [0], [0], [1], [0, 0, 1, 1], [], []>} : vector<256x16xf32>, vector<16x128xf32>, vector<256x128xf32> -> vector<256x128xf32>
    %c0_17 = arith.constant 0 : index
    %c0_18 = arith.constant 0 : index
    %13 = vector.load %arg6[%c0_17, %c0_18] : memref<16x256xf32, #tpu.memory_space<vmem>>, vector<16x256xf32>
    %cst_19 = arith.constant dense<0.000000e+00> : vector<16x128xf32>
    %14 = tpu.matmul %13, %9, %cst_19 {dimension_numbers = #tpu.dot_dimension_numbers<[1], [0], [0], [1], [0, 0, 1, 1], [], []>} : vector<16x256xf32>, vector<256x128xf32>, vector<16x128xf32> -> vector<16x128xf32>
    %15 = vector.broadcast %0 : vector<16x1xf32> to vector<16x128xf32>
    %16 = arith.addf %14, %15 : vector<16x128xf32>
    %17 = arith.negf %16 : vector<16x128xf32>
    %18 = math.exp %17 : vector<16x128xf32>
    %cst_20 = arith.constant 1.000000e+00 : f32
    %19 = vector.broadcast %cst_20 : f32 to vector<16x128xf32>
    %20 = arith.addf %19, %18 : vector<16x128xf32>
    %21 = arith.divf %19, %20 : vector<16x128xf32>
    %22 = arith.mulf %16, %21 : vector<16x128xf32>
    %c0_21 = arith.constant 0 : index
    %c0_22 = arith.constant 0 : index
    %23 = vector.load %arg7[%c0_21, %c0_22] : memref<256x16xf32, #tpu.memory_space<vmem>>, vector<256x16xf32>
    %cst_23 = arith.constant dense<0.000000e+00> : vector<256x128xf32>
    %24 = tpu.matmul %23, %22, %cst_23 {dimension_numbers = #tpu.dot_dimension_numbers<[1], [0], [0], [1], [0, 0, 1, 1], [], []>} : vector<256x16xf32>, vector<16x128xf32>, vector<256x128xf32> -> vector<256x128xf32>
    %25 = arith.mulf %24, %12 : vector<256x128xf32>
    %c0_24 = arith.constant 0 : index
    %c0_25 = arith.constant 0 : index
    %26 = vector.load %arg8[%c0_24, %c0_25] : memref<16x256xf32, #tpu.memory_space<vmem>>, vector<16x256xf32>
    %cst_26 = arith.constant dense<0.000000e+00> : vector<16x128xf32>
    %27 = tpu.matmul %26, %25, %cst_26 {dimension_numbers = #tpu.dot_dimension_numbers<[1], [0], [0], [1], [0, 0, 1, 1], [], []>} : vector<16x256xf32>, vector<256x128xf32>, vector<16x128xf32> -> vector<16x128xf32>
    %28 = vector.broadcast %1 : vector<16x1xf32> to vector<16x128xf32>
    %29 = arith.addf %27, %28 : vector<16x128xf32>
    %30 = arith.negf %29 : vector<16x128xf32>
    %31 = math.exp %30 : vector<16x128xf32>
    %cst_27 = arith.constant 1.000000e+00 : f32
    %32 = vector.broadcast %cst_27 : f32 to vector<16x128xf32>
    %33 = arith.addf %32, %31 : vector<16x128xf32>
    %34 = arith.divf %32, %33 : vector<16x128xf32>
    %35 = arith.mulf %29, %34 : vector<16x128xf32>
    %c0_28 = arith.constant 0 : index
    %c0_29 = arith.constant 0 : index
    %36 = vector.load %arg10[%c0_28, %c0_29] : memref<8x16xf32, #tpu.memory_space<vmem>>, vector<8x16xf32>
    %cst_30 = arith.constant dense<0.000000e+00> : vector<8x128xf32>
    %37 = tpu.matmul %36, %35, %cst_30 {dimension_numbers = #tpu.dot_dimension_numbers<[1], [0], [0], [1], [0, 0, 1, 1], [], []>} : vector<8x16xf32>, vector<16x128xf32>, vector<8x128xf32> -> vector<8x128xf32>
    %38 = vector.extract_strided_slice %37 {offsets = [0, 0], sizes = [1, 128], strides = [1, 1]} : vector<8x128xf32> to vector<1x128xf32>
    %39 = vector.broadcast %2 : vector<1x1xf32> to vector<1x128xf32>
    %40 = arith.addf %38, %39 : vector<1x128xf32>
    %c0_31 = arith.constant 0 : index
    %c0_32 = arith.constant 0 : index
    %41 = vector.load %arg11[%c0_31, %c0_32] : memref<1x128xf32, #tpu.memory_space<vmem>>, vector<1x128xf32>
    tpu.vector_store %arg11[%c0_31, %c0_32], %40 {strides = array<i32>} : memref<1x128xf32, #tpu.memory_space<vmem>>, vector<1x128xf32>,
    return
  }
  func.func @transform_0(%arg0: i32) -> (i32, i32) {
    %c0_i32 = arith.constant 0 : i32
    %c0_i32_0 = arith.constant 0 : i32
    return %c0_i32, %arg0 : i32, i32
  }
  func.func @transform_1(%arg0: i32) -> (i32, i32) {
    %c0_i32 = arith.constant 0 : i32
    %c0_i32_0 = arith.constant 0 : i32
    return %c0_i32, %arg0 : i32, i32
  }
  func.func @transform_2(%arg0: i32) -> (i32, i32) {
    %c0_i32 = arith.constant 0 : i32
    %c0_i32_0 = arith.constant 0 : i32
    %c0_i32_1 = arith.constant 0 : i32
    return %c0_i32, %c0_i32_0 : i32, i32
  }
  func.func @transform_3(%arg0: i32) -> (i32, i32) {
    %c0_i32 = arith.constant 0 : i32
    %c0_i32_0 = arith.constant 0 : i32
    %c0_i32_1 = arith.constant 0 : i32
    return %c0_i32, %c0_i32_0 : i32, i32
  }
  func.func @transform_4(%arg0: i32) -> (i32, i32) {
    %c0_i32 = arith.constant 0 : i32
    %c0_i32_0 = arith.constant 0 : i32
    %c0_i32_1 = arith.constant 0 : i32
    return %c0_i32, %c0_i32_0 : i32, i32
  }
  func.func @transform_5(%arg0: i32) -> (i32, i32) {
    %c0_i32 = arith.constant 0 : i32
    %c0_i32_0 = arith.constant 0 : i32
    %c0_i32_1 = arith.constant 0 : i32
    return %c0_i32, %c0_i32_0 : i32, i32
  }
  func.func @transform_6(%arg0: i32) -> (i32, i32) {
    %c0_i32 = arith.constant 0 : i32
    %c0_i32_0 = arith.constant 0 : i32
    %c0_i32_1 = arith.constant 0 : i32
    return %c0_i32, %c0_i32_0 : i32, i32
  }
  func.func @transform_7(%arg0: i32) -> (i32, i32) {
    %c0_i32 = arith.constant 0 : i32
    %c0_i32_0 = arith.constant 0 : i32
    %c0_i32_1 = arith.constant 0 : i32
    return %c0_i32, %c0_i32_0 : i32, i32
  }
  func.func @transform_8(%arg0: i32) -> (i32, i32) {
    %c0_i32 = arith.constant 0 : i32
    %c0_i32_0 = arith.constant 0 : i32
    %c0_i32_1 = arith.constant 0 : i32
    return %c0_i32, %c0_i32_0 : i32, i32
  }
  func.func @transform_9(%arg0: i32) -> (i32, i32) {
    %c0_i32 = arith.constant 0 : i32
    %c0_i32_0 = arith.constant 0 : i32
    %c0_i32_1 = arith.constant 0 : i32
    return %c0_i32, %c0_i32_0 : i32, i32
  }
  func.func @transform_10(%arg0: i32) -> (i32, i32) {
    %c0_i32 = arith.constant 0 : i32
    %c0_i32_0 = arith.constant 0 : i32
    return %c0_i32, %arg0 : i32, i32
  }
}

</mosaic_0001>

<llo_original>
// kernel: tpu_custom_call.1
$region0: #{tpu_custom_call.1}
  #allocation0 [shape = 'u32[]', space=smem, size = 0x4, offset = 0x4, fixed_abs, tag = 'smem constant byte address 0x4 - core index']
  #allocation1 [shape = 'u32[144,128]{1,0:T(1,128)}', space=vmem, size = 0x12000, scoped, tag = 'internal scratch']
  %s0 = inlined_call_operand.vmem [shape: f32[16,128], index: 0, kind: input, shape index: {}]
  %s1 = inlined_call_operand.vmem [shape: f32[16,128], index: 1, kind: input, shape index: {}]
  %s2 = inlined_call_operand.vmem [shape: f32[256,16], index: 2, kind: input, shape index: {}]
  %s3 = inlined_call_operand.vmem [shape: f32[256,16], index: 3, kind: input, shape index: {}]
  %s4 = inlined_call_operand.vmem [shape: f32[256,16], index: 4, kind: input, shape index: {}]
  %s5 = inlined_call_operand.vmem [shape: f32[16,256], index: 5, kind: input, shape index: {}]
  %s6 = inlined_call_operand.vmem [shape: f32[256,16], index: 6, kind: input, shape index: {}]
  %s7 = inlined_call_operand.vmem [shape: f32[16,256], index: 7, kind: input, shape index: {}]
  %s8 = inlined_call_operand.vmem [shape: f32[16,3], index: 8, kind: input, shape index: {}]
  %s9 = inlined_call_operand.vmem [shape: f32[8,16], index: 9, kind: input, shape index: {}]
  %s10 = inlined_call_operand.hbm [shape: f32[1,128], index: 10, kind: output, shape index: {}]
  %s11 = sld [smem:[#allocation0]]
  $region50: #{tpu_custom_call.1} parent=0
    _
  %s13 = ssub.s32 1, %s11
  %s14 = scalar_select 0, %s13, %s11
  $region1: #{tpu_custom_call.1} parent=0
    #allocation2 [shape = 'u8[512]{0}', space=vmem, size = 0x400, scoped, tag = 'output window, operand 0, single buffered']
    #allocation3 [shape = 's32[1]{0}', space=sflag, size = 0x4, scoped, tag = 'scoped memory for tpu_custom_call.1']
    %15 = vsyncpa [#allocation3], 0
    // Predicated region
    $region2: #{tpu_custom_call.1} parent=1 // pred_check
      _
    $region3: #{tpu_custom_call.1} parent=1 // pred_check_branch
      %17 = sbr.rel (0) target = $region5
    $region4: #{tpu_custom_call.1} parent=1 // pred_region
      _
    $region5: #{tpu_custom_call.1} parent=1 // pred_fallthru
      _
    // Predicated region
    $region6: #{tpu_custom_call.1} parent=1 // pred_check
      _
    $region7: #{tpu_custom_call.1} parent=1 // pred_check_branch
      %19 = sbr.rel (0) target = $region9
    $region8: #{tpu_custom_call.1} parent=1 // pred_region
      _
    $region9: #{tpu_custom_call.1} parent=1 // pred_fallthru
      _
    // Predicated region
    $region10: #{tpu_custom_call.1} parent=1 // pred_check
      _
    $region11: #{tpu_custom_call.1} parent=1 // pred_check_branch
      %21 = sbr.rel (0) target = $region13
    $region12: #{tpu_custom_call.1} parent=1 // pred_region
      _
    $region13: #{tpu_custom_call.1} parent=1 // pred_fallthru
      _
    // Predicated region
    $region14: #{tpu_custom_call.1} parent=1 // pred_check
      _
    $region15: #{tpu_custom_call.1} parent=1 // pred_check_branch
      %23 = sbr.rel (0) target = $region17
    $region16: #{tpu_custom_call.1} parent=1 // pred_region
      _
    $region17: #{tpu_custom_call.1} parent=1 // pred_fallthru
      _
    // Predicated region
    $region18: #{tpu_custom_call.1} parent=1 // pred_check
      _
    $region19: #{tpu_custom_call.1} parent=1 // pred_check_branch
      %25 = sbr.rel (0) target = $region21
    $region20: #{tpu_custom_call.1} parent=1 // pred_region
      _
    $region21: #{tpu_custom_call.1} parent=1 // pred_fallthru
      _
    // Predicated region
    $region22: #{tpu_custom_call.1} parent=1 // pred_check
      _
    $region23: #{tpu_custom_call.1} parent=1 // pred_check_branch
      %27 = sbr.rel (0) target = $region25
    $region24: #{tpu_custom_call.1} parent=1 // pred_region
      _
    $region25: #{tpu_custom_call.1} parent=1 // pred_fallthru
      _
    // Predicated region
    $region26: #{tpu_custom_call.1} parent=1 // pred_check
      _
    $region27: #{tpu_custom_call.1} parent=1 // pred_check_branch
      %29 = sbr.rel (0) target = $region29
    $region28: #{tpu_custom_call.1} parent=1 // pred_region
      _
    $region29: #{tpu_custom_call.1} parent=1 // pred_fallthru
      _
    // Predicated region
    $region30: #{tpu_custom_call.1} parent=1 // pred_check
      _
    $region31: #{tpu_custom_call.1} parent=1 // pred_check_branch
      %31 = sbr.rel (0) target = $region33
    $region32: #{tpu_custom_call.1} parent=1 // pred_region
      _
    $region33: #{tpu_custom_call.1} parent=1 // pred_fallthru
      _
    // Predicated region
    $region34: #{tpu_custom_call.1} parent=1 // pred_check
      _
    $region35: #{tpu_custom_call.1} parent=1 // pred_check_branch
      %33 = sbr.rel (0) target = $region37
    $region36: #{tpu_custom_call.1} parent=1 // pred_region
      _
    $region37: #{tpu_custom_call.1} parent=1 // pred_fallthru
      _
    // Predicated region
    $region38: #{tpu_custom_call.1} parent=1 // pred_check
      _
    $region39: #{tpu_custom_call.1} parent=1 // pred_check_branch
      %35 = sbr.rel (0) target = $region41
    $region40: #{tpu_custom_call.1} parent=1 // pred_region
      _
    $region41: #{tpu_custom_call.1} parent=1 // pred_fallthru
      _
    %v36 = vld [vmem:[%s8] sm:$0xff]
    %v37 = vld [vmem:[%s8 + $0x8] sm:$0xff]
    %v38 = vld [vmem:[%s8] sm:$0x1]
    %v39 = vld [vmem:[%s2] sm:$0xff]
    %v40 = vld [vmem:[%s2 + $0x8] sm:$0xff]
    %v41 = vld [vmem:[%s2 + $0x10] sm:$0xff]
    %v42 = vld [vmem:[%s2 + $0x18] sm:$0xff]
    %v43 = vld [vmem:[%s2 + $0x20] sm:$0xff]
    %v44 = vld [vmem:[%s2 + $0x28] sm:$0xff]
    %v45 = vld [vmem:[%s2 + $0x30] sm:$0xff]
    %v46 = vld [vmem:[%s2 + $0x38] sm:$0xff]
    %v47 = vld [vmem:[%s2 + $0x40] sm:$0xff]
    %v48 = vld [vmem:[%s2 + $0x48] sm:$0xff]
    %v49 = vld [vmem:[%s2 + $0x50] sm:$0xff]
    %v50 = vld [vmem:[%s2 + $0x58] sm:$0xff]
    %v51 = vld [vmem:[%s2 + $0x60] sm:$0xff]
    %v52 = vld [vmem:[%s2 + $0x68] sm:$0xff]
    %v53 = vld [vmem:[%s2 + $0x70] sm:$0xff]
    %v54 = vld [vmem:[%s2 + $0x78] sm:$0xff]
    %v55 = vld [vmem:[%s2 + $0x80] sm:$0xff]
    %v56 = vld [vmem:[%s2 + $0x88] sm:$0xff]
    %v57 = vld [vmem:[%s2 + $0x90] sm:$0xff]
    %v58 = vld [vmem:[%s2 + $0x98] sm:$0xff]
    %v59 = vld [vmem:[%s2 + $0xa0] sm:$0xff]
    %v60 = vld [vmem:[%s2 + $0xa8] sm:$0xff]
    %v61 = vld [vmem:[%s2 + $0xb0] sm:$0xff]
    %v62 = vld [vmem:[%s2 + $0xb8] sm:$0xff]
    %v63 = vld [vmem:[%s2 + $0xc0] sm:$0xff]
    %v64 = vld [vmem:[%s2 + $0xc8] sm:$0xff]
    %v65 = vld [vmem:[%s2 + $0xd0] sm:$0xff]
    %v66 = vld [vmem:[%s2 + $0xd8] sm:$0xff]
    %v67 = vld [vmem:[%s2 + $0xe0] sm:$0xff]
    %v68 = vld [vmem:[%s2 + $0xe8] sm:$0xff]
    %v69 = vld [vmem:[%s2 + $0xf0] sm:$0xff]
    %v70 = vld [vmem:[%s2 + $0xf8] sm:$0xff]
    %v71 = vld [vmem:[%s0] sm:$0xff]
    %v72 = vld [vmem:[%s0 + $0x8] sm:$0xff]
    %vm73 = vcmask 130048
    %v75 = vsel %vm73, %v39, 0
    %v78 = vsel %vm73, %v40, 0
    %v81 = vsel %vm73, %v41, 0
    %v84 = vsel %vm73, %v42, 0
    %v87 = vsel %vm73, %v43, 0
    %v90 = vsel %vm73, %v44, 0
    %v93 = vsel %vm73, %v45, 0
    %v96 = vsel %vm73, %v46, 0
    %v99 = vsel %vm73, %v47, 0
    %v102 = vsel %vm73, %v48, 0
    %v105 = vsel %vm73, %v49, 0
    %v108 = vsel %vm73, %v50, 0
    %v111 = vsel %vm73, %v51, 0
    %v114 = vsel %vm73, %v52, 0
    %v117 = vsel %vm73, %v53, 0
    %v120 = vsel %vm73, %v54, 0
    %v123 = vsel %vm73, %v55, 0
    %v126 = vsel %vm73, %v56, 0
    %v129 = vsel %vm73, %v57, 0
    %v132 = vsel %vm73, %v58, 0
    %v135 = vsel %vm73, %v59, 0
    %v138 = vsel %vm73, %v60, 0
    %v141 = vsel %vm73, %v61, 0
    %v144 = vsel %vm73, %v62, 0
    %v147 = vsel %vm73, %v63, 0
    %v150 = vsel %vm73, %v64, 0
    %v153 = vsel %vm73, %v65, 0
    %v156 = vsel %vm73, %v66, 0
    %v159 = vsel %vm73, %v67, 0
    %v162 = vsel %vm73, %v68, 0
    %v165 = vsel %vm73, %v69, 0
    %v168 = vsel %vm73, %v70, 0
    %170 = vmatprep.subr.mxu0 0.0
    %171 = vmatpush1.msra.mxu0 %v71
    %172 = vmatprep.subr.mxu0 0.0
    %173 = vmatpush1.msra.mxu0 %v72
    %174 = vmatprep.subr.mxu0 0.0
    %175 = vmatpush1.msra.mxu0 0.0
    %176 = vmatprep.subr.mxu0 0.0
    %177 = vmatpush1.msra.mxu0 0.0
    %178 = vmatprep.subr.mxu0 0.0
    %179 = vmatpush1.msra.mxu0 0.0
    %180 = vmatprep.subr.mxu0 0.0
    %181 = vmatpush1.msra.mxu0 0.0
    %182 = vmatprep.subr.mxu0 0.0
    %183 = vmatpush1.msra.mxu0 0.0
    %184 = vmatprep.subr.mxu0 0.0
    %185 = vmatpush1.msra.mxu0 0.0
    %186 = vmatprep.subr.mxu0 0.0
    %187 = vmatpush1.msra.mxu0 0.0
    %188 = vmatprep.subr.mxu0 0.0
    %189 = vmatpush1.msra.mxu0 0.0
    %190 = vmatprep.subr.mxu0 0.0
    %191 = vmatpush1.msra.mxu0 0.0
    %192 = vmatprep.subr.mxu0 0.0
    %193 = vmatpush1.msra.mxu0 0.0
    %194 = vmatprep.subr.mxu0 0.0
    %195 = vmatpush1.msra.mxu0 0.0
    %196 = vmatprep.subr.mxu0 0.0
    %197 = vmatpush1.msra.mxu0 0.0
    %198 = vmatprep.subr.mxu0 0.0
    %199 = vmatpush1.msra.mxu0 0.0
    %200 = vmatprep.subr.mxu0 0.0
    %201 = vmatpush1.msra.mxu0 0.0
    %202 = vmatprep.subr.mxu0 0.0
    %203 = vmatpush1.msra.mxu0 0.0
    %204 = vmatprep.subr.mxu0 0.0
    %205 = vmatpush1.msra.mxu0 0.0
    %206 = vmatprep.subr.mxu0 0.0
    %207 = vmatpush1.msra.mxu0 0.0
    %208 = vmatprep.subr.mxu0 0.0
    %209 = vmatpush1.msra.mxu0 0.0
    %210 = vmatprep.subr.mxu0 0.0
    %211 = vmatpush1.msra.mxu0 0.0
    %212 = vmatprep.subr.mxu0 0.0
    %213 = vmatpush1.msra.mxu0 0.0
    %214 = vmatprep.subr.mxu0 0.0
    %215 = vmatpush1.msra.mxu0 0.0
    %216 = vmatprep.subr.mxu0 0.0
    %217 = vmatpush1.msra.mxu0 0.0
    %218 = vmatprep.subr.mxu0 0.0
    %219 = vmatpush1.msra.mxu0 0.0
    %220 = vmatprep.subr.mxu0 0.0
    %221 = vmatpush1.msra.mxu0 0.0
    %222 = vmatprep.subr.mxu0 0.0
    %223 = vmatpush1.msra.mxu0 0.0
    %224 = vmatprep.subr.mxu0 0.0
    %225 = vmatpush1.msra.mxu0 0.0
    %226 = vmatprep.subr.mxu0 0.0
    %227 = vmatpush1.msra.mxu0 0.0
    %228 = vmatprep.subr.mxu0 0.0
    %229 = vmatpush1.msra.mxu0 0.0
    %230 = vmatprep.subr.mxu0 0.0
    %231 = vmatpush1.msra.mxu0 0.0
    %232 = vmatprep.subr.mxu0 0.0
    %233 = vmatpush1.msra.mxu0 0.0
    %234 = vmatprep.mubr.f32.mxu0 0.0
    %235 = vmatmul.mubr.f32.gmra.mrb[0].mxu0 %v75
    %v236 = vpop.f32.mrb[0].mxu0
    %v237 = vadd.f32 0.0, %v236
    %v238 = vpop.f32.mrb[0].mxu0
    %239 = vmatprep.mubr.f32.mxu0 0.0
    %240 = vmatmul.mubr.f32.gmra.mrb[0].mxu0 %v78
    %v241 = vpop.f32.mrb[0].mxu0
    %v242 = vadd.f32 0.0, %v241
    %v243 = vpop.f32.mrb[0].mxu0
    %244 = vmatprep.mubr.f32.mxu0 0.0
    %245 = vmatmul.mubr.f32.gmra.mrb[0].mxu0 %v81
    %v246 = vpop.f32.mrb[0].mxu0
    %v247 = vadd.f32 0.0, %v246
    %v248 = vpop.f32.mrb[0].mxu0
    %249 = vmatprep.mubr.f32.mxu0 0.0
    %250 = vmatmul.mubr.f32.gmra.mrb[0].mxu0 %v84
    %v251 = vpop.f32.mrb[0].mxu0
    %v252 = vadd.f32 0.0, %v251
    %v253 = vpop.f32.mrb[0].mxu0
    %254 = vmatprep.mubr.f32.mxu0 0.0
    %255 = vmatmul.mubr.f32.gmra.mrb[0].mxu0 %v87
    %v256 = vpop.f32.mrb[0].mxu0
    %v257 = vadd.f32 0.0, %v256
    %v258 = vpop.f32.mrb[0].mxu0
    %259 = vmatprep.mubr.f32.mxu0 0.0
    %260 = vmatmul.mubr.f32.gmra.mrb[0].mxu0 %v90
    %v261 = vpop.f32.mrb[0].mxu0
    %v262 = vadd.f32 0.0, %v261
    %v263 = vpop.f32.mrb[0].mxu0
    %264 = vmatprep.mubr.f32.mxu0 0.0
    %265 = vmatmul.mubr.f32.gmra.mrb[0].mxu0 %v93
    %v266 = vpop.f32.mrb[0].mxu0
    %v267 = vadd.f32 0.0, %v266
    %v268 = vpop.f32.mrb[0].mxu0
    %269 = vmatprep.mubr.f32.mxu0 0.0
    %270 = vmatmul.mubr.f32.gmra.mrb[0].mxu0 %v96
    %v271 = vpop.f32.mrb[0].mxu0
    %v272 = vadd.f32 0.0, %v271
    %v273 = vpop.f32.mrb[0].mxu0
    %274 = vmatprep.mubr.f32.mxu0 0.0
    %275 = vmatmul.mubr.f32.gmra.mrb[0].mxu0 %v99
    %v276 = vpop.f32.mrb[0].mxu0
    %v277 = vadd.f32 0.0, %v276
    %v278 = vpop.f32.mrb[0].mxu0
    %279 = vmatprep.mubr.f32.mxu0 0.0
    %280 = vmatmul.mubr.f32.gmra.mrb[0].mxu0 %v102
    %v281 = vpop.f32.mrb[0].mxu0
    %v282 = vadd.f32 0.0, %v281
    %v283 = vpop.f32.mrb[0].mxu0
    %284 = vmatprep.mubr.f32.mxu0 0.0
    %285 = vmatmul.mubr.f32.gmra.mrb[0].mxu0 %v105
    %v286 = vpop.f32.mrb[0].mxu0
    %v287 = vadd.f32 0.0, %v286
    %v288 = vpop.f32.mrb[0].mxu0
    %289 = vmatprep.mubr.f32.mxu0 0.0
    %290 = vmatmul.mubr.f32.gmra.mrb[0].mxu0 %v108
    %v291 = vpop.f32.mrb[0].mxu0
    %v292 = vadd.f32 0.0, %v291
    %v293 = vpop.f32.mrb[0].mxu0
    %294 = vmatprep.mubr.f32.mxu0 0.0
    %295 = vmatmul.mubr.f32.gmra.mrb[0].mxu0 %v111
    %v296 = vpop.f32.mrb[0].mxu0
    %v297 = vadd.f32 0.0, %v296
    %v298 = vpop.f32.mrb[0].mxu0
    %299 = vmatprep.mubr.f32.mxu0 0.0
    %300 = vmatmul.mubr.f32.gmra.mrb[0].mxu0 %v114
    %v301 = vpop.f32.mrb[0].mxu0
    %v302 = vadd.f32 0.0, %v301
    %v303 = vpop.f32.mrb[0].mxu0
    %304 = vmatprep.mubr.f32.mxu0 0.0
    %305 = vmatmul.mubr.f32.gmra.mrb[0].mxu0 %v117
    %v306 = vpop.f32.mrb[0].mxu0
    %v307 = vadd.f32 0.0, %v306
    %v308 = vpop.f32.mrb[0].mxu0
    %309 = vmatprep.mubr.f32.mxu0 0.0
    %310 = vmatmul.mubr.f32.gmra.mrb[0].mxu0 %v120
    %v311 = vpop.f32.mrb[0].mxu0
    %v312 = vadd.f32 0.0, %v311
    %v313 = vpop.f32.mrb[0].mxu0
    %314 = vmatprep.mubr.f32.mxu0 0.0
    %315 = vmatmul.mubr.f32.gmra.mrb[0].mxu0 %v123
    %v316 = vpop.f32.mrb[0].mxu0
    %v317 = vadd.f32 0.0, %v316
    %v318 = vpop.f32.mrb[0].mxu0
    %319 = vmatprep.mubr.f32.mxu0 0.0
    %320 = vmatmul.mubr.f32.gmra.mrb[0].mxu0 %v126
    %v321 = vpop.f32.mrb[0].mxu0
    %v322 = vadd.f32 0.0, %v321
    %v323 = vpop.f32.mrb[0].mxu0
    %324 = vmatprep.mubr.f32.mxu0 0.0
    %325 = vmatmul.mubr.f32.gmra.mrb[0].mxu0 %v129
    %v326 = vpop.f32.mrb[0].mxu0
    %v327 = vadd.f32 0.0, %v326
    %v328 = vpop.f32.mrb[0].mxu0
    %329 = vmatprep.mubr.f32.mxu0 0.0
    %330 = vmatmul.mubr.f32.gmra.mrb[0].mxu0 %v132
    %v331 = vpop.f32.mrb[0].mxu0
    %v332 = vadd.f32 0.0, %v331
    %v333 = vpop.f32.mrb[0].mxu0
    %334 = vmatprep.mubr.f32.mxu0 0.0
    %335 = vmatmul.mubr.f32.gmra.mrb[0].mxu0 %v135
    %v336 = vpop.f32.mrb[0].mxu0
    %v337 = vadd.f32 0.0, %v336
    %v338 = vpop.f32.mrb[0].mxu0
    %339 = vmatprep.mubr.f32.mxu0 0.0
    %340 = vmatmul.mubr.f32.gmra.mrb[0].mxu0 %v138
    %v341 = vpop.f32.mrb[0].mxu0
    %v342 = vadd.f32 0.0, %v341
    %v343 = vpop.f32.mrb[0].mxu0
    %344 = vmatprep.mubr.f32.mxu0 0.0
    %345 = vmatmul.mubr.f32.gmra.mrb[0].mxu0 %v141
    %v346 = vpop.f32.mrb[0].mxu0
    %v347 = vadd.f32 0.0, %v346
    %v348 = vpop.f32.mrb[0].mxu0
    %349 = vmatprep.mubr.f32.mxu0 0.0
    %350 = vmatmul.mubr.f32.gmra.mrb[0].mxu0 %v144
    %v351 = vpop.f32.mrb[0].mxu0
    %v352 = vadd.f32 0.0, %v351
    %v353 = vpop.f32.mrb[0].mxu0
    %354 = vmatprep.mubr.f32.mxu0 0.0
    %355 = vmatmul.mubr.f32.gmra.mrb[0].mxu0 %v147
    %v356 = vpop.f32.mrb[0].mxu0
    %v357 = vadd.f32 0.0, %v356
    %v358 = vpop.f32.mrb[0].mxu0
    %359 = vmatprep.mubr.f32.mxu0 0.0
    %360 = vmatmul.mubr.f32.gmra.mrb[0].mxu0 %v150
    %v361 = vpop.f32.mrb[0].mxu0
    %v362 = vadd.f32 0.0, %v361
    %v363 = vpop.f32.mrb[0].mxu0
    %364 = vmatprep.mubr.f32.mxu0 0.0
    %365 = vmatmul.mubr.f32.gmra.mrb[0].mxu0 %v153
    %v366 = vpop.f32.mrb[0].mxu0
    %v367 = vadd.f32 0.0, %v366
    %v368 = vpop.f32.mrb[0].mxu0
    %369 = vmatprep.mubr.f32.mxu0 0.0
    %370 = vmatmul.mubr.f32.gmra.mrb[0].mxu0 %v156
    %v371 = vpop.f32.mrb[0].mxu0
    %v372 = vadd.f32 0.0, %v371
    %v373 = vpop.f32.mrb[0].mxu0
    %374 = vmatprep.mubr.f32.mxu0 0.0
    %375 = vmatmul.mubr.f32.gmra.mrb[0].mxu0 %v159
    %v376 = vpop.f32.mrb[0].mxu0
    %v377 = vadd.f32 0.0, %v376
    %v378 = vpop.f32.mrb[0].mxu0
    %379 = vmatprep.mubr.f32.mxu0 0.0
    %380 = vmatmul.mubr.f32.gmra.mrb[0].mxu0 %v162
    %v381 = vpop.f32.mrb[0].mxu0
    %v382 = vadd.f32 0.0, %v381
    %v383 = vpop.f32.mrb[0].mxu0
    %384 = vmatprep.mubr.f32.mxu0 0.0
    %385 = vmatmul.mubr.f32.gmra.mrb[0].mxu0 %v165
    %v386 = vpop.f32.mrb[0].mxu0
    %v387 = vadd.f32 0.0, %v386
    %v388 = vpop.f32.mrb[0].mxu0
    %389 = vmatprep.mubr.f32.mxu0 0.0
    %390 = vmatmul.mubr.f32.gmra.mrb[0].mxu0 %v168
    %v391 = vpop.f32.mrb[0].mxu0
    %v392 = vadd.f32 0.0, %v391
    %v393 = vpop.f32.mrb[0].mxu0
    %394 = vdwg.mxu0
    %v395 = vld [vmem:[%s3] sm:$0xff]
    %v396 = vld [vmem:[%s3 + $0x8] sm:$0xff]
    %v397 = vld [vmem:[%s3 + $0x10] sm:$0xff]
    %v398 = vld [vmem:[%s3 + $0x18] sm:$0xff]
    %v399 = vld [vmem:[%s3 + $0x20] sm:$0xff]
    %v400 = vld [vmem:[%s3 + $0x28] sm:$0xff]
    %v401 = vld [vmem:[%s3 + $0x30] sm:$0xff]
    %v402 = vld [vmem:[%s3 + $0x38] sm:$0xff]
    %v403 = vld [vmem:[%s3 + $0x40] sm:$0xff]
    %v404 = vld [vmem:[%s3 + $0x48] sm:$0xff]
    %v405 = vld [vmem:[%s3 + $0x50] sm:$0xff]
    %v406 = vld [vmem:[%s3 + $0x58] sm:$0xff]
    %v407 = vld [vmem:[%s3 + $0x60] sm:$0xff]
    %v408 = vld [vmem:[%s3 + $0x68] sm:$0xff]
    %v409 = vld [vmem:[%s3 + $0x70] sm:$0xff]
    %v410 = vld [vmem:[%s3 + $0x78] sm:$0xff]
    %v411 = vld [vmem:[%s3 + $0x80] sm:$0xff]
    %v412 = vld [vmem:[%s3 + $0x88] sm:$0xff]
    %v413 = vld [vmem:[%s3 + $0x90] sm:$0xff]
    %v414 = vld [vmem:[%s3 + $0x98] sm:$0xff]
    %v415 = vld [vmem:[%s3 + $0xa0] sm:$0xff]
    %v416 = vld [vmem:[%s3 + $0xa8] sm:$0xff]
    %v417 = vld [vmem:[%s3 + $0xb0] sm:$0xff]
    %v418 = vld [vmem:[%s3 + $0xb8] sm:$0xff]
    %v419 = vld [vmem:[%s3 + $0xc0] sm:$0xff]
    %v420 = vld [vmem:[%s3 + $0xc8] sm:$0xff]
    %v421 = vld [vmem:[%s3 + $0xd0] sm:$0xff]
    %v422 = vld [vmem:[%s3 + $0xd8] sm:$0xff]
    %v423 = vld [vmem:[%s3 + $0xe0] sm:$0xff]
    %v424 = vld [vmem:[%s3 + $0xe8] sm:$0xff]
    %v425 = vld [vmem:[%s3 + $0xf0] sm:$0xff]
    %v426 = vld [vmem:[%s3 + $0xf8] sm:$0xff]
    %v427 = vld [vmem:[%s1] sm:$0xff]
    %v428 = vld [vmem:[%s1 + $0x8] sm:$0xff]
    %v430 = vsel %vm73, %v395, 0
    %v433 = vsel %vm73, %v396, 0
    %v436 = vsel %vm73, %v397, 0
    %v439 = vsel %vm73, %v398, 0
    %v442 = vsel %vm73, %v399, 0
    %v445 = vsel %vm73, %v400, 0
    %v448 = vsel %vm73, %v401, 0
    %v451 = vsel %vm73, %v402, 0
    %v454 = vsel %vm73, %v403, 0
    %v457 = vsel %vm73, %v404, 0
    %v460 = vsel %vm73, %v405, 0
    %v463 = vsel %vm73, %v406, 0
    %v466 = vsel %vm73, %v407, 0
    %v469 = vsel %vm73, %v408, 0
    %v472 = vsel %vm73, %v409, 0
    %v475 = vsel %vm73, %v410, 0
    %v478 = vsel %vm73, %v411, 0
    %v481 = vsel %vm73, %v412, 0
    %v484 = vsel %vm73, %v413, 0
    %v487 = vsel %vm73, %v414, 0
    %v490 = vsel %vm73, %v415, 0
    %v493 = vsel %vm73, %v416, 0
    %v496 = vsel %vm73, %v417, 0
    %v499 = vsel %vm73, %v418, 0
    %v502 = vsel %vm73, %v419, 0
    %v505 = vsel %vm73, %v420, 0
    %v508 = vsel %vm73, %v421, 0
    %v511 = vsel %vm73, %v422, 0
    %v514 = vsel %vm73, %v423, 0
    %v517 = vsel %vm73, %v424, 0
    %v520 = vsel %vm73, %v425, 0
    %v523 = vsel %vm73, %v426, 0
    %525 = vmatprep.subr.mxu0 0.0
    %526 = vmatpush1.msra.mxu0 %v427
    %527 = vmatprep.subr.mxu0 0.0
    %528 = vmatpush1.msra.mxu0 %v428
    %529 = vmatprep.subr.mxu0 0.0
    %530 = vmatpush1.msra.mxu0 0.0
    %531 = vmatprep.subr.mxu0 0.0
    %532 = vmatpush1.msra.mxu0 0.0
    %533 = vmatprep.subr.mxu0 0.0
    %534 = vmatpush1.msra.mxu0 0.0
    %535 = vmatprep.subr.mxu0 0.0
    %536 = vmatpush1.msra.mxu0 0.0
    %537 = vmatprep.subr.mxu0 0.0
    %538 = vmatpush1.msra.mxu0 0.0
    %539 = vmatprep.subr.mxu0 0.0
    %540 = vmatpush1.msra.mxu0 0.0
    %541 = vmatprep.subr.mxu0 0.0
    %542 = vmatpush1.msra.mxu0 0.0
    %543 = vmatprep.subr.mxu0 0.0
    %544 = vmatpush1.msra.mxu0 0.0
    %545 = vmatprep.subr.mxu0 0.0
    %546 = vmatpush1.msra.mxu0 0.0
    %547 = vmatprep.subr.mxu0 0.0
    %548 = vmatpush1.msra.mxu0 0.0
    %549 = vmatprep.subr.mxu0 0.0
    %550 = vmatpush1.msra.mxu0 0.0
    %551 = vmatprep.subr.mxu0 0.0
    %552 = vmatpush1.msra.mxu0 0.0
    %553 = vmatprep.subr.mxu0 0.0
    %554 = vmatpush1.msra.mxu0 0.0
    %555 = vmatprep.subr.mxu0 0.0
    %556 = vmatpush1.msra.mxu0 0.0
    %557 = vmatprep.subr.mxu0 0.0
    %558 = vmatpush1.msra.mxu0 0.0
    %559 = vmatprep.subr.mxu0 0.0
    %560 = vmatpush1.msra.mxu0 0.0
    %561 = vmatprep.subr.mxu0 0.0
    %562 = vmatpush1.msra.mxu0 0.0
    %563 = vmatprep.subr.mxu0 0.0
    %564 = vmatpush1.msra.mxu0 0.0
    %565 = vmatprep.subr.mxu0 0.0
    %566 = vmatpush1.msra.mxu0 0.0
    %567 = vmatprep.subr.mxu0 0.0
    %568 = vmatpush1.msra.mxu0 0.0
    %569 = vmatprep.subr.mxu0 0.0
    %570 = vmatpush1.msra.mxu0 0.0
    %571 = vmatprep.subr.mxu0 0.0
    %572 = vmatpush1.msra.mxu0 0.0
    %573 = vmatprep.subr.mxu0 0.0
    %574 = vmatpush1.msra.mxu0 0.0
    %575 = vmatprep.subr.mxu0 0.0
    %576 = vmatpush1.msra.mxu0 0.0
    %577 = vmatprep.subr.mxu0 0.0
    %578 = vmatpush1.msra.mxu0 0.0
    %579 = vmatprep.subr.mxu0 0.0
    %580 = vmatpush1.msra.mxu0 0.0
    %581 = vmatprep.subr.mxu0 0.0
    %582 = vmatpush1.msra.mxu0 0.0
    %583 = vmatprep.subr.mxu0 0.0
    %584 = vmatpush1.msra.mxu0 0.0
    %585 = vmatprep.subr.mxu0 0.0
    %586 = vmatpush1.msra.mxu0 0.0
    %587 = vmatprep.subr.mxu0 0.0
    %588 = vmatpush1.msra.mxu0 0.0
    %589 = vmatprep.mubr.f32.mxu0 0.0
    %590 = vmatmul.mubr.f32.gmra.mrb[0].mxu0 %v430
    %v591 = vpop.f32.mrb[0].mxu0
    %v592 = vadd.f32 0.0, %v591
    %v593 = vpop.f32.mrb[0].mxu0
    %594 = vmatprep.mubr.f32.mxu0 0.0
    %595 = vmatmul.mubr.f32.gmra.mrb[0].mxu0 %v433
    %v596 = vpop.f32.mrb[0].mxu0
    %v597 = vadd.f32 0.0, %v596
    %v598 = vpop.f32.mrb[0].mxu0
    %599 = vmatprep.mubr.f32.mxu0 0.0
    %600 = vmatmul.mubr.f32.gmra.mrb[0].mxu0 %v436
    %v601 = vpop.f32.mrb[0].mxu0
    %v602 = vadd.f32 0.0, %v601
    %v603 = vpop.f32.mrb[0].mxu0
    %604 = vmatprep.mubr.f32.mxu0 0.0
    %605 = vmatmul.mubr.f32.gmra.mrb[0].mxu0 %v439
    %v606 = vpop.f32.mrb[0].mxu0
    %v607 = vadd.f32 0.0, %v606
    %v608 = vpop.f32.mrb[0].mxu0
    %609 = vmatprep.mubr.f32.mxu0 0.0
    %610 = vmatmul.mubr.f32.gmra.mrb[0].mxu0 %v442
    %v611 = vpop.f32.mrb[0].mxu0
    %v612 = vadd.f32 0.0, %v611
    %v613 = vpop.f32.mrb[0].mxu0
    %614 = vmatprep.mubr.f32.mxu0 0.0
    %615 = vmatmul.mubr.f32.gmra.mrb[0].mxu0 %v445
    %v616 = vpop.f32.mrb[0].mxu0
    %v617 = vadd.f32 0.0, %v616
    %v618 = vpop.f32.mrb[0].mxu0
    %619 = vmatprep.mubr.f32.mxu0 0.0
    %620 = vmatmul.mubr.f32.gmra.mrb[0].mxu0 %v448
    %v621 = vpop.f32.mrb[0].mxu0
    %v622 = vadd.f32 0.0, %v621
    %v623 = vpop.f32.mrb[0].mxu0
    %624 = vmatprep.mubr.f32.mxu0 0.0
    %625 = vmatmul.mubr.f32.gmra.mrb[0].mxu0 %v451
    %v626 = vpop.f32.mrb[0].mxu0
    %v627 = vadd.f32 0.0, %v626
    %v628 = vpop.f32.mrb[0].mxu0
    %629 = vmatprep.mubr.f32.mxu0 0.0
    %630 = vmatmul.mubr.f32.gmra.mrb[0].mxu0 %v454
    %v631 = vpop.f32.mrb[0].mxu0
    %v632 = vadd.f32 0.0, %v631
    %v633 = vpop.f32.mrb[0].mxu0
    %634 = vmatprep.mubr.f32.mxu0 0.0
    %635 = vmatmul.mubr.f32.gmra.mrb[0].mxu0 %v457
    %v636 = vpop.f32.mrb[0].mxu0
    %v637 = vadd.f32 0.0, %v636
    %v638 = vpop.f32.mrb[0].mxu0
    %639 = vmatprep.mubr.f32.mxu0 0.0
    %640 = vmatmul.mubr.f32.gmra.mrb[0].mxu0 %v460
    %v641 = vpop.f32.mrb[0].mxu0
    %v642 = vadd.f32 0.0, %v641
    %v643 = vpop.f32.mrb[0].mxu0
    %644 = vmatprep.mubr.f32.mxu0 0.0
    %645 = vmatmul.mubr.f32.gmra.mrb[0].mxu0 %v463
    %v646 = vpop.f32.mrb[0].mxu0
    %v647 = vadd.f32 0.0, %v646
    %v648 = vpop.f32.mrb[0].mxu0
    %649 = vmatprep.mubr.f32.mxu0 0.0
    %650 = vmatmul.mubr.f32.gmra.mrb[0].mxu0 %v466
    %v651 = vpop.f32.mrb[0].mxu0
    %v652 = vadd.f32 0.0, %v651
    %v653 = vpop.f32.mrb[0].mxu0
    %654 = vmatprep.mubr.f32.mxu0 0.0
    %655 = vmatmul.mubr.f32.gmra.mrb[0].mxu0 %v469
    %v656 = vpop.f32.mrb[0].mxu0
    %v657 = vadd.f32 0.0, %v656
    %v658 = vpop.f32.mrb[0].mxu0
    %659 = vmatprep.mubr.f32.mxu0 0.0
    %660 = vmatmul.mubr.f32.gmra.mrb[0].mxu0 %v472
    %v661 = vpop.f32.mrb[0].mxu0
    %v662 = vadd.f32 0.0, %v661
    %v663 = vpop.f32.mrb[0].mxu0
    %664 = vmatprep.mubr.f32.mxu0 0.0
    %665 = vmatmul.mubr.f32.gmra.mrb[0].mxu0 %v475
    %v666 = vpop.f32.mrb[0].mxu0
    %v667 = vadd.f32 0.0, %v666
    %v668 = vpop.f32.mrb[0].mxu0
    %669 = vmatprep.mubr.f32.mxu0 0.0
    %670 = vmatmul.mubr.f32.gmra.mrb[0].mxu0 %v478
    %v671 = vpop.f32.mrb[0].mxu0
    %v672 = vadd.f32 0.0, %v671
    %v673 = vpop.f32.mrb[0].mxu0
    %674 = vmatprep.mubr.f32.mxu0 0.0
    %675 = vmatmul.mubr.f32.gmra.mrb[0].mxu0 %v481
    %v676 = vpop.f32.mrb[0].mxu0
    %v677 = vadd.f32 0.0, %v676
    %v678 = vpop.f32.mrb[0].mxu0
    %679 = vmatprep.mubr.f32.mxu0 0.0
    %680 = vmatmul.mubr.f32.gmra.mrb[0].mxu0 %v484
    %v681 = vpop.f32.mrb[0].mxu0
    %v682 = vadd.f32 0.0, %v681
    %v683 = vpop.f32.mrb[0].mxu0
    %684 = vmatprep.mubr.f32.mxu0 0.0
    %685 = vmatmul.mubr.f32.gmra.mrb[0].mxu0 %v487
    %v686 = vpop.f32.mrb[0].mxu0
    %v687 = vadd.f32 0.0, %v686
    %v688 = vpop.f32.mrb[0].mxu0
    %689 = vmatprep.mubr.f32.mxu0 0.0
    %690 = vmatmul.mubr.f32.gmra.mrb[0].mxu0 %v490
    %v691 = vpop.f32.mrb[0].mxu0
    %v692 = vadd.f32 0.0, %v691
    %v693 = vpop.f32.mrb[0].mxu0
    %694 = vmatprep.mubr.f32.mxu0 0.0
    %695 = vmatmul.mubr.f32.gmra.mrb[0].mxu0 %v493
    %v696 = vpop.f32.mrb[0].mxu0
    %v697 = vadd.f32 0.0, %v696
    %v698 = vpop.f32.mrb[0].mxu0
    %699 = vmatprep.mubr.f32.mxu0 0.0
    %700 = vmatmul.mubr.f32.gmra.mrb[0].mxu0 %v496
    %v701 = vpop.f32.mrb[0].mxu0
    %v702 = vadd.f32 0.0, %v701
    %v703 = vpop.f32.mrb[0].mxu0
    %704 = vmatprep.mubr.f32.mxu0 0.0
    %705 = vmatmul.mubr.f32.gmra.mrb[0].mxu0 %v499
    %v706 = vpop.f32.mrb[0].mxu0
    %v707 = vadd.f32 0.0, %v706
    %v708 = vpop.f32.mrb[0].mxu0
    %709 = vmatprep.mubr.f32.mxu0 0.0
    %710 = vmatmul.mubr.f32.gmra.mrb[0].mxu0 %v502
    %v711 = vpop.f32.mrb[0].mxu0
    %v712 = vadd.f32 0.0, %v711
    %v713 = vpop.f32.mrb[0].mxu0
    %714 = vmatprep.mubr.f32.mxu0 0.0
    %715 = vmatmul.mubr.f32.gmra.mrb[0].mxu0 %v505
    %v716 = vpop.f32.mrb[0].mxu0
    %v717 = vadd.f32 0.0, %v716
    %v718 = vpop.f32.mrb[0].mxu0
    %719 = vmatprep.mubr.f32.mxu0 0.0
    %720 = vmatmul.mubr.f32.gmra.mrb[0].mxu0 %v508
    %v721 = vpop.f32.mrb[0].mxu0
    %v722 = vadd.f32 0.0, %v721
    %v723 = vpop.f32.mrb[0].mxu0
    %724 = vmatprep.mubr.f32.mxu0 0.0
    %725 = vmatmul.mubr.f32.gmra.mrb[0].mxu0 %v511
    %v726 = vpop.f32.mrb[0].mxu0
    %v727 = vadd.f32 0.0, %v726
    %v728 = vpop.f32.mrb[0].mxu0
    %729 = vmatprep.mubr.f32.mxu0 0.0
    %730 = vmatmul.mubr.f32.gmra.mrb[0].mxu0 %v514
    %v731 = vpop.f32.mrb[0].mxu0
    %v732 = vadd.f32 0.0, %v731
    %v733 = vpop.f32.mrb[0].mxu0
    %734 = vmatprep.mubr.f32.mxu0 0.0
    %735 = vmatmul.mubr.f32.gmra.mrb[0].mxu0 %v517
    %v736 = vpop.f32.mrb[0].mxu0
    %v737 = vadd.f32 0.0, %v736
    %v738 = vpop.f32.mrb[0].mxu0
    %739 = vmatprep.mubr.f32.mxu0 0.0
    %740 = vmatmul.mubr.f32.gmra.mrb[0].mxu0 %v520
    %v741 = vpop.f32.mrb[0].mxu0
    %v742 = vadd.f32 0.0, %v741
    %v743 = vpop.f32.mrb[0].mxu0
    %744 = vmatprep.mubr.f32.mxu0 0.0
    %745 = vmatmul.mubr.f32.gmra.mrb[0].mxu0 %v523
    %v746 = vpop.f32.mrb[0].mxu0
    %v747 = vadd.f32 0.0, %v746
    %v748 = vpop.f32.mrb[0].mxu0
    %749 = vdwg.mxu0
    %v750 = vmul.f32 %v237, %v592
    %v751 = vmul.f32 %v242, %v597
    %v752 = vmul.f32 %v247, %v602
    %v753 = vmul.f32 %v252, %v607
    %v754 = vmul.f32 %v257, %v612
    %v755 = vmul.f32 %v262, %v617
    %v756 = vmul.f32 %v267, %v622
    %v757 = vmul.f32 %v272, %v627
    %v758 = vmul.f32 %v277, %v632
    %v759 = vmul.f32 %v282, %v637
    %v760 = vmul.f32 %v287, %v642
    %v761 = vmul.f32 %v292, %v647
    %v762 = vmul.f32 %v297, %v652
    %v763 = vmul.f32 %v302, %v657
    %v764 = vmul.f32 %v307, %v662
    %v765 = vmul.f32 %v312, %v667
    %v766 = vmul.f32 %v317, %v672
    %v767 = vmul.f32 %v322, %v677
    %v768 = vmul.f32 %v327, %v682
    %v769 = vmul.f32 %v332, %v687
    %v770 = vmul.f32 %v337, %v692
    %v771 = vmul.f32 %v342, %v697
    %v772 = vmul.f32 %v347, %v702
    %v773 = vmul.f32 %v352, %v707
    %v774 = vmul.f32 %v357, %v712
    %v775 = vmul.f32 %v362, %v717
    %v776 = vmul.f32 %v367, %v722
    %v777 = vmul.f32 %v372, %v727
    %v778 = vmul.f32 %v377, %v732
    %v779 = vmul.f32 %v382, %v737
    %v780 = vmul.f32 %v387, %v742
    %v781 = vmul.f32 %v392, %v747
    %v782 = vld [vmem:[%s4] sm:$0xff]
    %v783 = vld [vmem:[%s4 + $0x8] sm:$0xff]
    %v784 = vld [vmem:[%s4 + $0x10] sm:$0xff]
    %v785 = vld [vmem:[%s4 + $0x18] sm:$0xff]
    %v786 = vld [vmem:[%s4 + $0x20] sm:$0xff]
    %v787 = vld [vmem:[%s4 + $0x28] sm:$0xff]
    %v788 = vld [vmem:[%s4 + $0x30] sm:$0xff]
    %v789 = vld [vmem:[%s4 + $0x38] sm:$0xff]
    %v790 = vld [vmem:[%s4 + $0x40] sm:$0xff]
    %v791 = vld [vmem:[%s4 + $0x48] sm:$0xff]
    %v792 = vld [vmem:[%s4 + $0x50] sm:$0xff]
    %v793 = vld [vmem:[%s4 + $0x58] sm:$0xff]
    %v794 = vld [vmem:[%s4 + $0x60] sm:$0xff]
    %v795 = vld [vmem:[%s4 + $0x68] sm:$0xff]
    %v796 = vld [vmem:[%s4 + $0x70] sm:$0xff]
    %v797 = vld [vmem:[%s4 + $0x78] sm:$0xff]
    %v798 = vld [vmem:[%s4 + $0x80] sm:$0xff]
    %v799 = vld [vmem:[%s4 + $0x88] sm:$0xff]
    %v800 = vld [vmem:[%s4 + $0x90] sm:$0xff]
    %v801 = vld [vmem:[%s4 + $0x98] sm:$0xff]
    %v802 = vld [vmem:[%s4 + $0xa0] sm:$0xff]
    %v803 = vld [vmem:[%s4 + $0xa8] sm:$0xff]
    %v804 = vld [vmem:[%s4 + $0xb0] sm:$0xff]
    %v805 = vld [vmem:[%s4 + $0xb8] sm:$0xff]
    %v806 = vld [vmem:[%s4 + $0xc0] sm:$0xff]
    %v807 = vld [vmem:[%s4 + $0xc8] sm:$0xff]
    %v808 = vld [vmem:[%s4 + $0xd0] sm:$0xff]
    %v809 = vld [vmem:[%s4 + $0xd8] sm:$0xff]
    %v810 = vld [vmem:[%s4 + $0xe0] sm:$0xff]
    %v811 = vld [vmem:[%s4 + $0xe8] sm:$0xff]
    %v812 = vld [vmem:[%s4 + $0xf0] sm:$0xff]
    %v813 = vld [vmem:[%s4 + $0xf8] sm:$0xff]
    %v815 = vsel %vm73, %v782, 0
    %v818 = vsel %vm73, %v783, 0
    %v821 = vsel %vm73, %v784, 0
    %v824 = vsel %vm73, %v785, 0
    %v827 = vsel %vm73, %v786, 0
    %v830 = vsel %vm73, %v787, 0
    %v833 = vsel %vm73, %v788, 0
    %v836 = vsel %vm73, %v789, 0
    %v839 = vsel %vm73, %v790, 0
    %v842 = vsel %vm73, %v791, 0
    %v845 = vsel %vm73, %v792, 0
    %v848 = vsel %vm73, %v793, 0
    %v851 = vsel %vm73, %v794, 0
    %v854 = vsel %vm73, %v795, 0
    %v857 = vsel %vm73, %v796, 0
    %v860 = vsel %vm73, %v797, 0
    %v863 = vsel %vm73, %v798, 0
    %v866 = vsel %vm73, %v799, 0
    %v869 = vsel %vm73, %v800, 0
    %v872 = vsel %vm73, %v801, 0
    %v875 = vsel %vm73, %v802, 0
    %v878 = vsel %vm73, %v803, 0
    %v881 = vsel %vm73, %v804, 0
    %v884 = vsel %vm73, %v805, 0
    %v887 = vsel %vm73, %v806, 0
    %v890 = vsel %vm73, %v807, 0
    %v893 = vsel %vm73, %v808, 0
    %v896 = vsel %vm73, %v809, 0
    %v899 = vsel %vm73, %v810, 0
    %v902 = vsel %vm73, %v811, 0
    %v905 = vsel %vm73, %v812, 0
    %v908 = vsel %vm73, %v813, 0
    %910 = vmatprep.subr.mxu0 0.0
    %911 = vmatpush1.msra.mxu0 %v427
    %912 = vmatprep.subr.mxu0 0.0
    %913 = vmatpush1.msra.mxu0 %v428
    %914 = vmatprep.subr.mxu0 0.0
    %915 = vmatpush1.msra.mxu0 0.0
    %916 = vmatprep.subr.mxu0 0.0
    %917 = vmatpush1.msra.mxu0 0.0
    %918 = vmatprep.subr.mxu0 0.0
    %919 = vmatpush1.msra.mxu0 0.0
    %920 = vmatprep.subr.mxu0 0.0
    %921 = vmatpush1.msra.mxu0 0.0
    %922 = vmatprep.subr.mxu0 0.0
    %923 = vmatpush1.msra.mxu0 0.0
    %924 = vmatprep.subr.mxu0 0.0
    %925 = vmatpush1.msra.mxu0 0.0
    %926 = vmatprep.subr.mxu0 0.0
    %927 = vmatpush1.msra.mxu0 0.0
    %928 = vmatprep.subr.mxu0 0.0
    %929 = vmatpush1.msra.mxu0 0.0
    %930 = vmatprep.subr.mxu0 0.0
    %931 = vmatpush1.msra.mxu0 0.0
    %932 = vmatprep.subr.mxu0 0.0
    %933 = vmatpush1.msra.mxu0 0.0
    %934 = vmatprep.subr.mxu0 0.0
    %935 = vmatpush1.msra.mxu0 0.0
    %936 = vmatprep.subr.mxu0 0.0
    %937 = vmatpush1.msra.mxu0 0.0
    %938 = vmatprep.subr.mxu0 0.0
    %939 = vmatpush1.msra.mxu0 0.0
    %940 = vmatprep.subr.mxu0 0.0
    %941 = vmatpush1.msra.mxu0 0.0
    %942 = vmatprep.subr.mxu0 0.0
    %943 = vmatpush1.msra.mxu0 0.0
    %944 = vmatprep.subr.mxu0 0.0
    %945 = vmatpush1.msra.mxu0 0.0
    %946 = vmatprep.subr.mxu0 0.0
    %947 = vmatpush1.msra.mxu0 0.0
    %948 = vmatprep.subr.mxu0 0.0
    %949 = vmatpush1.msra.mxu0 0.0
    %950 = vmatprep.subr.mxu0 0.0
    %951 = vmatpush1.msra.mxu0 0.0
    %952 = vmatprep.subr.mxu0 0.0
    %953 = vmatpush1.msra.mxu0 0.0
    %954 = vmatprep.subr.mxu0 0.0
    %955 = vmatpush1.msra.mxu0 0.0
    %956 = vmatprep.subr.mxu0 0.0
    %957 = vmatpush1.msra.mxu0 0.0
    %958 = vmatprep.subr.mxu0 0.0
    %959 = vmatpush1.msra.mxu0 0.0
    %960 = vmatprep.subr.mxu0 0.0
    %961 = vmatpush1.msra.mxu0 0.0
    %962 = vmatprep.subr.mxu0 0.0
    %963 = vmatpush1.msra.mxu0 0.0
    %964 = vmatprep.subr.mxu0 0.0
    %965 = vmatpush1.msra.mxu0 0.0
    %966 = vmatprep.subr.mxu0 0.0
    %967 = vmatpush1.msra.mxu0 0.0
    %968 = vmatprep.subr.mxu0 0.0
    %969 = vmatpush1.msra.mxu0 0.0
    %970 = vmatprep.subr.mxu0 0.0
    %971 = vmatpush1.msra.mxu0 0.0
    %972 = vmatprep.subr.mxu0 0.0
    %973 = vmatpush1.msra.mxu0 0.0
    %974 = vmatprep.mubr.f32.mxu0 0.0
    %975 = vmatmul.mubr.f32.gmra.mrb[0].mxu0 %v815
    %v976 = vpop.f32.mrb[0].mxu0
    %v977 = vadd.f32 0.0, %v976
    %v978 = vpop.f32.mrb[0].mxu0
    %979 = vmatprep.mubr.f32.mxu0 0.0
    %980 = vmatmul.mubr.f32.gmra.mrb[0].mxu0 %v818
    %v981 = vpop.f32.mrb[0].mxu0
    %v982 = vadd.f32 0.0, %v981
    %v983 = vpop.f32.mrb[0].mxu0
    %984 = vmatprep.mubr.f32.mxu0 0.0
    %985 = vmatmul.mubr.f32.gmra.mrb[0].mxu0 %v821
    %v986 = vpop.f32.mrb[0].mxu0
    %v987 = vadd.f32 0.0, %v986
    %v988 = vpop.f32.mrb[0].mxu0
    %989 = vmatprep.mubr.f32.mxu0 0.0
    %990 = vmatmul.mubr.f32.gmra.mrb[0].mxu0 %v824
    %v991 = vpop.f32.mrb[0].mxu0
    %v992 = vadd.f32 0.0, %v991
    %v993 = vpop.f32.mrb[0].mxu0
    %994 = vmatprep.mubr.f32.mxu0 0.0
    %995 = vmatmul.mubr.f32.gmra.mrb[0].mxu0 %v827
    %v996 = vpop.f32.mrb[0].mxu0
    %v997 = vadd.f32 0.0, %v996
    %v998 = vpop.f32.mrb[0].mxu0
    %999 = vmatprep.mubr.f32.mxu0 0.0
    %1000 = vmatmul.mubr.f32.gmra.mrb[0].mxu0 %v830
    %v1001 = vpop.f32.mrb[0].mxu0
    %v1002 = vadd.f32 0.0, %v1001
    %v1003 = vpop.f32.mrb[0].mxu0
    %1004 = vmatprep.mubr.f32.mxu0 0.0
    %1005 = vmatmul.mubr.f32.gmra.mrb[0].mxu0 %v833
    %v1006 = vpop.f32.mrb[0].mxu0
    %v1007 = vadd.f32 0.0, %v1006
    %v1008 = vpop.f32.mrb[0].mxu0
    %1009 = vmatprep.mubr.f32.mxu0 0.0
    %1010 = vmatmul.mubr.f32.gmra.mrb[0].mxu0 %v836
    %v1011 = vpop.f32.mrb[0].mxu0
    %v1012 = vadd.f32 0.0, %v1011
    %v1013 = vpop.f32.mrb[0].mxu0
    %1014 = vmatprep.mubr.f32.mxu0 0.0
    %1015 = vmatmul.mubr.f32.gmra.mrb[0].mxu0 %v839
    %v1016 = vpop.f32.mrb[0].mxu0
    %v1017 = vadd.f32 0.0, %v1016
    %v1018 = vpop.f32.mrb[0].mxu0
    %1019 = vmatprep.mubr.f32.mxu0 0.0
    %1020 = vmatmul.mubr.f32.gmra.mrb[0].mxu0 %v842
    %v1021 = vpop.f32.mrb[0].mxu0
    %v1022 = vadd.f32 0.0, %v1021
    %v1023 = vpop.f32.mrb[0].mxu0
    %1024 = vmatprep.mubr.f32.mxu0 0.0
    %1025 = vmatmul.mubr.f32.gmra.mrb[0].mxu0 %v845
    %v1026 = vpop.f32.mrb[0].mxu0
    %v1027 = vadd.f32 0.0, %v1026
    %v1028 = vpop.f32.mrb[0].mxu0
    %1029 = vmatprep.mubr.f32.mxu0 0.0
    %1030 = vmatmul.mubr.f32.gmra.mrb[0].mxu0 %v848
    %v1031 = vpop.f32.mrb[0].mxu0
    %v1032 = vadd.f32 0.0, %v1031
    %v1033 = vpop.f32.mrb[0].mxu0
    %1034 = vmatprep.mubr.f32.mxu0 0.0
    %1035 = vmatmul.mubr.f32.gmra.mrb[0].mxu0 %v851
    %v1036 = vpop.f32.mrb[0].mxu0
    %v1037 = vadd.f32 0.0, %v1036
    %v1038 = vpop.f32.mrb[0].mxu0
    %1039 = vmatprep.mubr.f32.mxu0 0.0
    %1040 = vmatmul.mubr.f32.gmra.mrb[0].mxu0 %v854
    %v1041 = vpop.f32.mrb[0].mxu0
    %v1042 = vadd.f32 0.0, %v1041
    %v1043 = vpop.f32.mrb[0].mxu0
    %1044 = vmatprep.mubr.f32.mxu0 0.0
    %1045 = vmatmul.mubr.f32.gmra.mrb[0].mxu0 %v857
    %v1046 = vpop.f32.mrb[0].mxu0
    %v1047 = vadd.f32 0.0, %v1046
    %v1048 = vpop.f32.mrb[0].mxu0
    %1049 = vmatprep.mubr.f32.mxu0 0.0
    %1050 = vmatmul.mubr.f32.gmra.mrb[0].mxu0 %v860
    %v1051 = vpop.f32.mrb[0].mxu0
    %v1052 = vadd.f32 0.0, %v1051
    %v1053 = vpop.f32.mrb[0].mxu0
    %1054 = vmatprep.mubr.f32.mxu0 0.0
    %1055 = vmatmul.mubr.f32.gmra.mrb[0].mxu0 %v863
    %v1056 = vpop.f32.mrb[0].mxu0
    %v1057 = vadd.f32 0.0, %v1056
    %v1058 = vpop.f32.mrb[0].mxu0
    %1059 = vmatprep.mubr.f32.mxu0 0.0
    %1060 = vmatmul.mubr.f32.gmra.mrb[0].mxu0 %v866
    %v1061 = vpop.f32.mrb[0].mxu0
    %v1062 = vadd.f32 0.0, %v1061
    %v1063 = vpop.f32.mrb[0].mxu0
    %1064 = vmatprep.mubr.f32.mxu0 0.0
    %1065 = vmatmul.mubr.f32.gmra.mrb[0].mxu0 %v869
    %v1066 = vpop.f32.mrb[0].mxu0
    %v1067 = vadd.f32 0.0, %v1066
    %v1068 = vpop.f32.mrb[0].mxu0
    %1069 = vmatprep.mubr.f32.mxu0 0.0
    %1070 = vmatmul.mubr.f32.gmra.mrb[0].mxu0 %v872
    %v1071 = vpop.f32.mrb[0].mxu0
    %v1072 = vadd.f32 0.0, %v1071
    %v1073 = vpop.f32.mrb[0].mxu0
    %1074 = vmatprep.mubr.f32.mxu0 0.0
    %1075 = vmatmul.mubr.f32.gmra.mrb[0].mxu0 %v875
    %v1076 = vpop.f32.mrb[0].mxu0
    %v1077 = vadd.f32 0.0, %v1076
    %v1078 = vpop.f32.mrb[0].mxu0
    %1079 = vmatprep.mubr.f32.mxu0 0.0
    %1080 = vmatmul.mubr.f32.gmra.mrb[0].mxu0 %v878
    %v1081 = vpop.f32.mrb[0].mxu0
    %v1082 = vadd.f32 0.0, %v1081
    %v1083 = vpop.f32.mrb[0].mxu0
    %1084 = vmatprep.mubr.f32.mxu0 0.0
    %1085 = vmatmul.mubr.f32.gmra.mrb[0].mxu0 %v881
    %v1086 = vpop.f32.mrb[0].mxu0
    %v1087 = vadd.f32 0.0, %v1086
    %v1088 = vpop.f32.mrb[0].mxu0
    %1089 = vmatprep.mubr.f32.mxu0 0.0
    %1090 = vmatmul.mubr.f32.gmra.mrb[0].mxu0 %v884
    %v1091 = vpop.f32.mrb[0].mxu0
    %v1092 = vadd.f32 0.0, %v1091
    %v1093 = vpop.f32.mrb[0].mxu0
    %1094 = vmatprep.mubr.f32.mxu0 0.0
    %1095 = vmatmul.mubr.f32.gmra.mrb[0].mxu0 %v887
    %v1096 = vpop.f32.mrb[0].mxu0
    %v1097 = vadd.f32 0.0, %v1096
    %v1098 = vpop.f32.mrb[0].mxu0
    %1099 = vmatprep.mubr.f32.mxu0 0.0
    %1100 = vmatmul.mubr.f32.gmra.mrb[0].mxu0 %v890
    %v1101 = vpop.f32.mrb[0].mxu0
    %v1102 = vadd.f32 0.0, %v1101
    %v1103 = vpop.f32.mrb[0].mxu0
    %1104 = vmatprep.mubr.f32.mxu0 0.0
    %1105 = vmatmul.mubr.f32.gmra.mrb[0].mxu0 %v893
    %v1106 = vpop.f32.mrb[0].mxu0
    %v1107 = vadd.f32 0.0, %v1106
    %v1108 = vpop.f32.mrb[0].mxu0
    %1109 = vmatprep.mubr.f32.mxu0 0.0
    %1110 = vmatmul.mubr.f32.gmra.mrb[0].mxu0 %v896
    %v1111 = vpop.f32.mrb[0].mxu0
    %v1112 = vadd.f32 0.0, %v1111
    %v1113 = vpop.f32.mrb[0].mxu0
    %1114 = vmatprep.mubr.f32.mxu0 0.0
    %1115 = vmatmul.mubr.f32.gmra.mrb[0].mxu0 %v899
    %v1116 = vpop.f32.mrb[0].mxu0
    %v1117 = vadd.f32 0.0, %v1116
    %v1118 = vpop.f32.mrb[0].mxu0
    %1119 = vmatprep.mubr.f32.mxu0 0.0
    %1120 = vmatmul.mubr.f32.gmra.mrb[0].mxu0 %v902
    %v1121 = vpop.f32.mrb[0].mxu0
    %v1122 = vadd.f32 0.0, %v1121
    %v1123 = vpop.f32.mrb[0].mxu0
    %1124 = vmatprep.mubr.f32.mxu0 0.0
    %1125 = vmatmul.mubr.f32.gmra.mrb[0].mxu0 %v905
    %v1126 = vpop.f32.mrb[0].mxu0
    %v1127 = vadd.f32 0.0, %v1126
    %v1128 = vpop.f32.mrb[0].mxu0
    %1129 = vmatprep.mubr.f32.mxu0 0.0
    %1130 = vmatmul.mubr.f32.gmra.mrb[0].mxu0 %v908
    %v1131 = vpop.f32.mrb[0].mxu0
    %v1132 = vadd.f32 0.0, %v1131
    %v1133 = vpop.f32.mrb[0].mxu0
    %1134 = vdwg.mxu0
    %v1135 = vld [vmem:[%s5] sm:$0xff]
    %v1136 = vld [vmem:[%s5 + $0x8] sm:$0xff]
    %v1137 = vld [vmem:[%s5 + $0x10] sm:$0xff]
    %v1138 = vld [vmem:[%s5 + $0x18] sm:$0xff]
    %1140 = vset.pattern.permute.xlu0 0
    %1141 = vperm.xlu0 %1140, %v36
    %v1142 = vpop.permute.xlu0 %1141
    %1145 = vset.pattern.permute.xlu0 0
    %1146 = vperm.xlu0 %1145, %v37
    %v1147 = vpop.permute.xlu0 %1146
    %1149 = vmatprep.subr.mxu0 0.0
    %1150 = vmatpush1.msra.mxu0 %v750
    %1151 = vmatprep.subr.mxu0 0.0
    %1152 = vmatpush1.msra.mxu0 %v751
    %1153 = vmatprep.subr.mxu0 0.0
    %1154 = vmatpush1.msra.mxu0 %v752
    %1155 = vmatprep.subr.mxu0 0.0
    %1156 = vmatpush1.msra.mxu0 %v753
    %1157 = vmatprep.subr.mxu0 0.0
    %1158 = vmatpush1.msra.mxu0 %v754
    %1159 = vmatprep.subr.mxu0 0.0
    %1160 = vmatpush1.msra.mxu0 %v755
    %1161 = vmatprep.subr.mxu0 0.0
    %1162 = vmatpush1.msra.mxu0 %v756
    %1163 = vmatprep.subr.mxu0 0.0
    %1164 = vmatpush1.msra.mxu0 %v757
    %1165 = vmatprep.subr.mxu0 0.0
    %1166 = vmatpush1.msra.mxu0 %v758
    %1167 = vmatprep.subr.mxu0 0.0
    %1168 = vmatpush1.msra.mxu0 %v759
    %1169 = vmatprep.subr.mxu0 0.0
    %1170 = vmatpush1.msra.mxu0 %v760
    %1171 = vmatprep.subr.mxu0 0.0
    %1172 = vmatpush1.msra.mxu0 %v761
    %1173 = vmatprep.subr.mxu0 0.0
    %1174 = vmatpush1.msra.mxu0 %v762
    %1175 = vmatprep.subr.mxu0 0.0
    %1176 = vmatpush1.msra.mxu0 %v763
    %1177 = vmatprep.subr.mxu0 0.0
    %1178 = vmatpush1.msra.mxu0 %v764
    %1179 = vmatprep.subr.mxu0 0.0
    %1180 = vmatpush1.msra.mxu0 %v765
    %1181 = vmatprep.subr.mxu0 0.0
    %1182 = vmatpush1.msra.mxu0 %v766
    %1183 = vmatprep.subr.mxu0 0.0
    %1184 = vmatpush1.msra.mxu0 %v767
    %1185 = vmatprep.subr.mxu0 0.0
    %1186 = vmatpush1.msra.mxu0 %v768
    %1187 = vmatprep.subr.mxu0 0.0
    %1188 = vmatpush1.msra.mxu0 %v769
    %1189 = vmatprep.subr.mxu0 0.0
    %1190 = vmatpush1.msra.mxu0 %v770
    %1191 = vmatprep.subr.mxu0 0.0
    %1192 = vmatpush1.msra.mxu0 %v771
    %1193 = vmatprep.subr.mxu0 0.0
    %1194 = vmatpush1.msra.mxu0 %v772
    %1195 = vmatprep.subr.mxu0 0.0
    %1196 = vmatpush1.msra.mxu0 %v773
    %1197 = vmatprep.subr.mxu0 0.0
    %1198 = vmatpush1.msra.mxu0 %v774
    %1199 = vmatprep.subr.mxu0 0.0
    %1200 = vmatpush1.msra.mxu0 %v775
    %1201 = vmatprep.subr.mxu0 0.0
    %1202 = vmatpush1.msra.mxu0 %v776
    %1203 = vmatprep.subr.mxu0 0.0
    %1204 = vmatpush1.msra.mxu0 %v777
    %1205 = vmatprep.subr.mxu0 0.0
    %1206 = vmatpush1.msra.mxu0 %v778
    %1207 = vmatprep.subr.mxu0 0.0
    %1208 = vmatpush1.msra.mxu0 %v779
    %1209 = vmatprep.subr.mxu0 0.0
    %1210 = vmatpush1.msra.mxu0 %v780
    %1211 = vmatprep.subr.mxu0 0.0
    %1212 = vmatpush1.msra.mxu0 %v781
    %1213 = vmatprep.mubr.f32.mxu0 %v1136
    %1214 = vmatmul.mubr.f32.gmra.mrb[0].mxu0 %v1135
    %v1215 = vpop.f32.mrb[0].mxu0
    %v1216 = vadd.f32 %v1142, %v1215
    %v1217 = vpop.f32.mrb[0].mxu0
    %1218 = vmatprep.mubr.f32.mxu0 %v1138
    %1219 = vmatmul.mubr.f32.gmra.mrb[0].mxu0 %v1137
    %v1220 = vpop.f32.mrb[0].mxu0
    %v1221 = vadd.f32 %v1147, %v1220
    %v1222 = vpop.f32.mrb[0].mxu0
    %1223 = vdwg.mxu0
    %v1224 = vxor.u32 %v1216, 2147483648
    %v1225 = vxor.u32 %v1221, 2147483648
    %v1226 = vmul.f32 %v1224, 1.442695
    %v1227 = vpow.pop %v1226
    %v1228 = vmul.f32 %v1225, 1.442695
    %v1229 = vpow.pop %v1228
    %v1230 = vadd.f32 %v1227, 1.0
    %v1231 = vadd.f32 %v1229, 1.0
    %v1232 = vrcp.pop %v1230
    %v1233 = vmul.f32 1.0, %v1232
    %v1234 = vrcp.pop %v1231
    %v1235 = vmul.f32 1.0, %v1234
    %v1236 = vmul.f32 %v1216, %v1233
    %v1237 = vmul.f32 %v1221, %v1235
    %v1238 = vld [vmem:[%s6] sm:$0xff]
    %v1239 = vld [vmem:[%s6 + $0x8] sm:$0xff]
    %v1240 = vld [vmem:[%s6 + $0x10] sm:$0xff]
    %v1241 = vld [vmem:[%s6 + $0x18] sm:$0xff]
    %v1242 = vld [vmem:[%s6 + $0x20] sm:$0xff]
    %v1243 = vld [vmem:[%s6 + $0x28] sm:$0xff]
    %v1244 = vld [vmem:[%s6 + $0x30] sm:$0xff]
    %v1245 = vld [vmem:[%s6 + $0x38] sm:$0xff]
    %v1246 = vld [vmem:[%s6 + $0x40] sm:$0xff]
    %v1247 = vld [vmem:[%s6 + $0x48] sm:$0xff]
    %v1248 = vld [vmem:[%s6 + $0x50] sm:$0xff]
    %v1249 = vld [vmem:[%s6 + $0x58] sm:$0xff]
    %v1250 = vld [vmem:[%s6 + $0x60] sm:$0xff]
    %v1251 = vld [vmem:[%s6 + $0x68] sm:$0xff]
    %v1252 = vld [vmem:[%s6 + $0x70] sm:$0xff]
    %v1253 = vld [vmem:[%s6 + $0x78] sm:$0xff]
    %v1254 = vld [vmem:[%s6 + $0x80] sm:$0xff]
    %v1255 = vld [vmem:[%s6 + $0x88] sm:$0xff]
    %v1256 = vld [vmem:[%s6 + $0x90] sm:$0xff]
    %v1257 = vld [vmem:[%s6 + $0x98] sm:$0xff]
    %v1258 = vld [vmem:[%s6 + $0xa0] sm:$0xff]
    %v1259 = vld [vmem:[%s6 + $0xa8] sm:$0xff]
    %v1260 = vld [vmem:[%s6 + $0xb0] sm:$0xff]
    %v1261 = vld [vmem:[%s6 + $0xb8] sm:$0xff]
    %v1262 = vld [vmem:[%s6 + $0xc0] sm:$0xff]
    %v1263 = vld [vmem:[%s6 + $0xc8] sm:$0xff]
    %v1264 = vld [vmem:[%s6 + $0xd0] sm:$0xff]
    %v1265 = vld [vmem:[%s6 + $0xd8] sm:$0xff]
    %v1266 = vld [vmem:[%s6 + $0xe0] sm:$0xff]
    %v1267 = vld [vmem:[%s6 + $0xe8] sm:$0xff]
    %v1268 = vld [vmem:[%s6 + $0xf0] sm:$0xff]
    %v1269 = vld [vmem:[%s6 + $0xf8] sm:$0xff]
    %v1271 = vsel %vm73, %v1238, 0
    %v1274 = vsel %vm73, %v1239, 0
    %v1277 = vsel %vm73, %v1240, 0
    %v1280 = vsel %vm73, %v1241, 0
    %v1283 = vsel %vm73, %v1242, 0
    %v1286 = vsel %vm73, %v1243, 0
    %v1289 = vsel %vm73, %v1244, 0
    %v1292 = vsel %vm73, %v1245, 0
    %v1295 = vsel %vm73, %v1246, 0
    %v1298 = vsel %vm73, %v1247, 0
    %v1301 = vsel %vm73, %v1248, 0
    %v1304 = vsel %vm73, %v1249, 0
    %v1307 = vsel %vm73, %v1250, 0
    %v1310 = vsel %vm73, %v1251, 0
    %v1313 = vsel %vm73, %v1252, 0
    %v1316 = vsel %vm73, %v1253, 0
    %v1319 = vsel %vm73, %v1254, 0
    %v1322 = vsel %vm73, %v1255, 0
    %v1325 = vsel %vm73, %v1256, 0
    %v1328 = vsel %vm73, %v1257, 0
    %v1331 = vsel %vm73, %v1258, 0
    %v1334 = vsel %vm73, %v1259, 0
    %v1337 = vsel %vm73, %v1260, 0
    %v1340 = vsel %vm73, %v1261, 0
    %v1343 = vsel %vm73, %v1262, 0
    %v1346 = vsel %vm73, %v1263, 0
    %v1349 = vsel %vm73, %v1264, 0
    %v1352 = vsel %vm73, %v1265, 0
    %v1355 = vsel %vm73, %v1266, 0
    %v1358 = vsel %vm73, %v1267, 0
    %v1361 = vsel %vm73, %v1268, 0
    %v1364 = vsel %vm73, %v1269, 0
    %1366 = vmatprep.subr.mxu0 0.0
    %1367 = vmatpush1.msra.mxu0 %v1236
    %1368 = vmatprep.subr.mxu0 0.0
    %1369 = vmatpush1.msra.mxu0 %v1237
    %1370 = vmatprep.subr.mxu0 0.0
    %1371 = vmatpush1.msra.mxu0 0.0
    %1372 = vmatprep.subr.mxu0 0.0
    %1373 = vmatpush1.msra.mxu0 0.0
    %1374 = vmatprep.subr.mxu0 0.0
    %1375 = vmatpush1.msra.mxu0 0.0
    %1376 = vmatprep.subr.mxu0 0.0
    %1377 = vmatpush1.msra.mxu0 0.0
    %1378 = vmatprep.subr.mxu0 0.0
    %1379 = vmatpush1.msra.mxu0 0.0
    %1380 = vmatprep.subr.mxu0 0.0
    %1381 = vmatpush1.msra.mxu0 0.0
    %1382 = vmatprep.subr.mxu0 0.0
    %1383 = vmatpush1.msra.mxu0 0.0
    %1384 = vmatprep.subr.mxu0 0.0
    %1385 = vmatpush1.msra.mxu0 0.0
    %1386 = vmatprep.subr.mxu0 0.0
    %1387 = vmatpush1.msra.mxu0 0.0
    %1388 = vmatprep.subr.mxu0 0.0
    %1389 = vmatpush1.msra.mxu0 0.0
    %1390 = vmatprep.subr.mxu0 0.0
    %1391 = vmatpush1.msra.mxu0 0.0
    %1392 = vmatprep.subr.mxu0 0.0
    %1393 = vmatpush1.msra.mxu0 0.0
    %1394 = vmatprep.subr.mxu0 0.0
    %1395 = vmatpush1.msra.mxu0 0.0
    %1396 = vmatprep.subr.mxu0 0.0
    %1397 = vmatpush1.msra.mxu0 0.0
    %1398 = vmatprep.subr.mxu0 0.0
    %1399 = vmatpush1.msra.mxu0 0.0
    %1400 = vmatprep.subr.mxu0 0.0
    %1401 = vmatpush1.msra.mxu0 0.0
    %1402 = vmatprep.subr.mxu0 0.0
    %1403 = vmatpush1.msra.mxu0 0.0
    %1404 = vmatprep.subr.mxu0 0.0
    %1405 = vmatpush1.msra.mxu0 0.0
    %1406 = vmatprep.subr.mxu0 0.0
    %1407 = vmatpush1.msra.mxu0 0.0
    %1408 = vmatprep.subr.mxu0 0.0
    %1409 = vmatpush1.msra.mxu0 0.0
    %1410 = vmatprep.subr.mxu0 0.0
    %1411 = vmatpush1.msra.mxu0 0.0
    %1412 = vmatprep.subr.mxu0 0.0
    %1413 = vmatpush1.msra.mxu0 0.0
    %1414 = vmatprep.subr.mxu0 0.0
    %1415 = vmatpush1.msra.mxu0 0.0
    %1416 = vmatprep.subr.mxu0 0.0
    %1417 = vmatpush1.msra.mxu0 0.0
    %1418 = vmatprep.subr.mxu0 0.0
    %1419 = vmatpush1.msra.mxu0 0.0
    %1420 = vmatprep.subr.mxu0 0.0
    %1421 = vmatpush1.msra.mxu0 0.0
    %1422 = vmatprep.subr.mxu0 0.0
    %1423 = vmatpush1.msra.mxu0 0.0
    %1424 = vmatprep.subr.mxu0 0.0
    %1425 = vmatpush1.msra.mxu0 0.0
    %1426 = vmatprep.subr.mxu0 0.0
    %1427 = vmatpush1.msra.mxu0 0.0
    %1428 = vmatprep.subr.mxu0 0.0
    %1429 = vmatpush1.msra.mxu0 0.0
    %1430 = vmatprep.mubr.f32.mxu0 0.0
    %1431 = vmatmul.mubr.f32.gmra.mrb[0].mxu0 %v1271
    %v1432 = vpop.f32.mrb[0].mxu0
    %v1433 = vadd.f32 0.0, %v1432
    %v1434 = vpop.f32.mrb[0].mxu0
    %1435 = vmatprep.mubr.f32.mxu0 0.0
    %1436 = vmatmul.mubr.f32.gmra.mrb[0].mxu0 %v1274
    %v1437 = vpop.f32.mrb[0].mxu0
    %v1438 = vadd.f32 0.0, %v1437
    %v1439 = vpop.f32.mrb[0].mxu0
    %1440 = vmatprep.mubr.f32.mxu0 0.0
    %1441 = vmatmul.mubr.f32.gmra.mrb[0].mxu0 %v1277
    %v1442 = vpop.f32.mrb[0].mxu0
    %v1443 = vadd.f32 0.0, %v1442
    %v1444 = vpop.f32.mrb[0].mxu0
    %1445 = vmatprep.mubr.f32.mxu0 0.0
    %1446 = vmatmul.mubr.f32.gmra.mrb[0].mxu0 %v1280
    %v1447 = vpop.f32.mrb[0].mxu0
    %v1448 = vadd.f32 0.0, %v1447
    %v1449 = vpop.f32.mrb[0].mxu0
    %1450 = vmatprep.mubr.f32.mxu0 0.0
    %1451 = vmatmul.mubr.f32.gmra.mrb[0].mxu0 %v1283
    %v1452 = vpop.f32.mrb[0].mxu0
    %v1453 = vadd.f32 0.0, %v1452
    %v1454 = vpop.f32.mrb[0].mxu0
    %1455 = vmatprep.mubr.f32.mxu0 0.0
    %1456 = vmatmul.mubr.f32.gmra.mrb[0].mxu0 %v1286
    %v1457 = vpop.f32.mrb[0].mxu0
    %v1458 = vadd.f32 0.0, %v1457
    %v1459 = vpop.f32.mrb[0].mxu0
    %1460 = vmatprep.mubr.f32.mxu0 0.0
    %1461 = vmatmul.mubr.f32.gmra.mrb[0].mxu0 %v1289
    %v1462 = vpop.f32.mrb[0].mxu0
    %v1463 = vadd.f32 0.0, %v1462
    %v1464 = vpop.f32.mrb[0].mxu0
    %1465 = vmatprep.mubr.f32.mxu0 0.0
    %1466 = vmatmul.mubr.f32.gmra.mrb[0].mxu0 %v1292
    %v1467 = vpop.f32.mrb[0].mxu0
    %v1468 = vadd.f32 0.0, %v1467
    %v1469 = vpop.f32.mrb[0].mxu0
    %1470 = vmatprep.mubr.f32.mxu0 0.0
    %1471 = vmatmul.mubr.f32.gmra.mrb[0].mxu0 %v1295
    %v1472 = vpop.f32.mrb[0].mxu0
    %v1473 = vadd.f32 0.0, %v1472
    %v1474 = vpop.f32.mrb[0].mxu0
    %1475 = vmatprep.mubr.f32.mxu0 0.0
    %1476 = vmatmul.mubr.f32.gmra.mrb[0].mxu0 %v1298
    %v1477 = vpop.f32.mrb[0].mxu0
    %v1478 = vadd.f32 0.0, %v1477
    %v1479 = vpop.f32.mrb[0].mxu0
    %1480 = vmatprep.mubr.f32.mxu0 0.0
    %1481 = vmatmul.mubr.f32.gmra.mrb[0].mxu0 %v1301
    %v1482 = vpop.f32.mrb[0].mxu0
    %v1483 = vadd.f32 0.0, %v1482
    %v1484 = vpop.f32.mrb[0].mxu0
    %1485 = vmatprep.mubr.f32.mxu0 0.0
    %1486 = vmatmul.mubr.f32.gmra.mrb[0].mxu0 %v1304
    %v1487 = vpop.f32.mrb[0].mxu0
    %v1488 = vadd.f32 0.0, %v1487
    %v1489 = vpop.f32.mrb[0].mxu0
    %1490 = vmatprep.mubr.f32.mxu0 0.0
    %1491 = vmatmul.mubr.f32.gmra.mrb[0].mxu0 %v1307
    %v1492 = vpop.f32.mrb[0].mxu0
    %v1493 = vadd.f32 0.0, %v1492
    %v1494 = vpop.f32.mrb[0].mxu0
    %1495 = vmatprep.mubr.f32.mxu0 0.0
    %1496 = vmatmul.mubr.f32.gmra.mrb[0].mxu0 %v1310
    %v1497 = vpop.f32.mrb[0].mxu0
    %v1498 = vadd.f32 0.0, %v1497
    %v1499 = vpop.f32.mrb[0].mxu0
    %1500 = vmatprep.mubr.f32.mxu0 0.0
    %1501 = vmatmul.mubr.f32.gmra.mrb[0].mxu0 %v1313
    %v1502 = vpop.f32.mrb[0].mxu0
    %v1503 = vadd.f32 0.0, %v1502
    %v1504 = vpop.f32.mrb[0].mxu0
    %1505 = vmatprep.mubr.f32.mxu0 0.0
    %1506 = vmatmul.mubr.f32.gmra.mrb[0].mxu0 %v1316
    %v1507 = vpop.f32.mrb[0].mxu0
    %v1508 = vadd.f32 0.0, %v1507
    %v1509 = vpop.f32.mrb[0].mxu0
    %1510 = vmatprep.mubr.f32.mxu0 0.0
    %1511 = vmatmul.mubr.f32.gmra.mrb[0].mxu0 %v1319
    %v1512 = vpop.f32.mrb[0].mxu0
    %v1513 = vadd.f32 0.0, %v1512
    %v1514 = vpop.f32.mrb[0].mxu0
    %1515 = vmatprep.mubr.f32.mxu0 0.0
    %1516 = vmatmul.mubr.f32.gmra.mrb[0].mxu0 %v1322
    %v1517 = vpop.f32.mrb[0].mxu0
    %v1518 = vadd.f32 0.0, %v1517
    %v1519 = vpop.f32.mrb[0].mxu0
    %1520 = vmatprep.mubr.f32.mxu0 0.0
    %1521 = vmatmul.mubr.f32.gmra.mrb[0].mxu0 %v1325
    %v1522 = vpop.f32.mrb[0].mxu0
    %v1523 = vadd.f32 0.0, %v1522
    %v1524 = vpop.f32.mrb[0].mxu0
    %1525 = vmatprep.mubr.f32.mxu0 0.0
    %1526 = vmatmul.mubr.f32.gmra.mrb[0].mxu0 %v1328
    %v1527 = vpop.f32.mrb[0].mxu0
    %v1528 = vadd.f32 0.0, %v1527
    %v1529 = vpop.f32.mrb[0].mxu0
    %1530 = vmatprep.mubr.f32.mxu0 0.0
    %1531 = vmatmul.mubr.f32.gmra.mrb[0].mxu0 %v1331
    %v1532 = vpop.f32.mrb[0].mxu0
    %v1533 = vadd.f32 0.0, %v1532
    %v1534 = vpop.f32.mrb[0].mxu0
    %1535 = vmatprep.mubr.f32.mxu0 0.0
    %1536 = vmatmul.mubr.f32.gmra.mrb[0].mxu0 %v1334
    %v1537 = vpop.f32.mrb[0].mxu0
    %v1538 = vadd.f32 0.0, %v1537
    %v1539 = vpop.f32.mrb[0].mxu0
    %1540 = vmatprep.mubr.f32.mxu0 0.0
    %1541 = vmatmul.mubr.f32.gmra.mrb[0].mxu0 %v1337
    %v1542 = vpop.f32.mrb[0].mxu0
    %v1543 = vadd.f32 0.0, %v1542
    %v1544 = vpop.f32.mrb[0].mxu0
    %1545 = vmatprep.mubr.f32.mxu0 0.0
    %1546 = vmatmul.mubr.f32.gmra.mrb[0].mxu0 %v1340
    %v1547 = vpop.f32.mrb[0].mxu0
    %v1548 = vadd.f32 0.0, %v1547
    %v1549 = vpop.f32.mrb[0].mxu0
    %1550 = vmatprep.mubr.f32.mxu0 0.0
    %1551 = vmatmul.mubr.f32.gmra.mrb[0].mxu0 %v1343
    %v1552 = vpop.f32.mrb[0].mxu0
    %v1553 = vadd.f32 0.0, %v1552
    %v1554 = vpop.f32.mrb[0].mxu0
    %1555 = vmatprep.mubr.f32.mxu0 0.0
    %1556 = vmatmul.mubr.f32.gmra.mrb[0].mxu0 %v1346
    %v1557 = vpop.f32.mrb[0].mxu0
    %v1558 = vadd.f32 0.0, %v1557
    %v1559 = vpop.f32.mrb[0].mxu0
    %1560 = vmatprep.mubr.f32.mxu0 0.0
    %1561 = vmatmul.mubr.f32.gmra.mrb[0].mxu0 %v1349
    %v1562 = vpop.f32.mrb[0].mxu0
    %v1563 = vadd.f32 0.0, %v1562
    %v1564 = vpop.f32.mrb[0].mxu0
    %1565 = vmatprep.mubr.f32.mxu0 0.0
    %1566 = vmatmul.mubr.f32.gmra.mrb[0].mxu0 %v1352
    %v1567 = vpop.f32.mrb[0].mxu0
    %v1568 = vadd.f32 0.0, %v1567
    %v1569 = vpop.f32.mrb[0].mxu0
    %1570 = vmatprep.mubr.f32.mxu0 0.0
    %1571 = vmatmul.mubr.f32.gmra.mrb[0].mxu0 %v1355
    %v1572 = vpop.f32.mrb[0].mxu0
    %v1573 = vadd.f32 0.0, %v1572
    %v1574 = vpop.f32.mrb[0].mxu0
    %1575 = vmatprep.mubr.f32.mxu0 0.0
    %1576 = vmatmul.mubr.f32.gmra.mrb[0].mxu0 %v1358
    %v1577 = vpop.f32.mrb[0].mxu0
    %v1578 = vadd.f32 0.0, %v1577
    %v1579 = vpop.f32.mrb[0].mxu0
    %1580 = vmatprep.mubr.f32.mxu0 0.0
    %1581 = vmatmul.mubr.f32.gmra.mrb[0].mxu0 %v1361
    %v1582 = vpop.f32.mrb[0].mxu0
    %v1583 = vadd.f32 0.0, %v1582
    %v1584 = vpop.f32.mrb[0].mxu0
    %1585 = vmatprep.mubr.f32.mxu0 0.0
    %1586 = vmatmul.mubr.f32.gmra.mrb[0].mxu0 %v1364
    %v1587 = vpop.f32.mrb[0].mxu0
    %v1588 = vadd.f32 0.0, %v1587
    %v1589 = vpop.f32.mrb[0].mxu0
    %1590 = vdwg.mxu0
    %v1591 = vmul.f32 %v1433, %v977
    %v1592 = vmul.f32 %v1438, %v982
    %v1593 = vmul.f32 %v1443, %v987
    %v1594 = vmul.f32 %v1448, %v992
    %v1595 = vmul.f32 %v1453, %v997
    %v1596 = vmul.f32 %v1458, %v1002
    %v1597 = vmul.f32 %v1463, %v1007
    %v1598 = vmul.f32 %v1468, %v1012
    %v1599 = vmul.f32 %v1473, %v1017
    %v1600 = vmul.f32 %v1478, %v1022
    %v1601 = vmul.f32 %v1483, %v1027
    %v1602 = vmul.f32 %v1488, %v1032
    %v1603 = vmul.f32 %v1493, %v1037
    %v1604 = vmul.f32 %v1498, %v1042
    %v1605 = vmul.f32 %v1503, %v1047
    %v1606 = vmul.f32 %v1508, %v1052
    %v1607 = vmul.f32 %v1513, %v1057
    %v1608 = vmul.f32 %v1518, %v1062
    %v1609 = vmul.f32 %v1523, %v1067
    %v1610 = vmul.f32 %v1528, %v1072
    %v1611 = vmul.f32 %v1533, %v1077
    %v1612 = vmul.f32 %v1538, %v1082
    %v1613 = vmul.f32 %v1543, %v1087
    %v1614 = vmul.f32 %v1548, %v1092
    %v1615 = vmul.f32 %v1553, %v1097
    %v1616 = vmul.f32 %v1558, %v1102
    %v1617 = vmul.f32 %v1563, %v1107
    %v1618 = vmul.f32 %v1568, %v1112
    %v1619 = vmul.f32 %v1573, %v1117
    %v1620 = vmul.f32 %v1578, %v1122
    %v1621 = vmul.f32 %v1583, %v1127
    %v1622 = vmul.f32 %v1588, %v1132
    %v1623 = vld [vmem:[%s7] sm:$0xff]
    %v1624 = vld [vmem:[%s7 + $0x8] sm:$0xff]
    %v1625 = vld [vmem:[%s7 + $0x10] sm:$0xff]
    %v1626 = vld [vmem:[%s7 + $0x18] sm:$0xff]
    %1627 = vset.pattern.permute.xlu0 1
    %1628 = vperm.xlu0 %1627, %v36
    %v1629 = vpop.permute.xlu0 %1628
    %1631 = vset.pattern.permute.xlu0 1
    %1632 = vperm.xlu0 %1631, %v37
    %v1633 = vpop.permute.xlu0 %1632
    %1635 = vmatprep.subr.mxu0 0.0
    %1636 = vmatpush1.msra.mxu0 %v1591
    %1637 = vmatprep.subr.mxu0 0.0
    %1638 = vmatpush1.msra.mxu0 %v1592
    %1639 = vmatprep.subr.mxu0 0.0
    %1640 = vmatpush1.msra.mxu0 %v1593
    %1641 = vmatprep.subr.mxu0 0.0
    %1642 = vmatpush1.msra.mxu0 %v1594
    %1643 = vmatprep.subr.mxu0 0.0
    %1644 = vmatpush1.msra.mxu0 %v1595
    %1645 = vmatprep.subr.mxu0 0.0
    %1646 = vmatpush1.msra.mxu0 %v1596
    %1647 = vmatprep.subr.mxu0 0.0
    %1648 = vmatpush1.msra.mxu0 %v1597
    %1649 = vmatprep.subr.mxu0 0.0
    %1650 = vmatpush1.msra.mxu0 %v1598
    %1651 = vmatprep.subr.mxu0 0.0
    %1652 = vmatpush1.msra.mxu0 %v1599
    %1653 = vmatprep.subr.mxu0 0.0
    %1654 = vmatpush1.msra.mxu0 %v1600
    %1655 = vmatprep.subr.mxu0 0.0
    %1656 = vmatpush1.msra.mxu0 %v1601
    %1657 = vmatprep.subr.mxu0 0.0
    %1658 = vmatpush1.msra.mxu0 %v1602
    %1659 = vmatprep.subr.mxu0 0.0
    %1660 = vmatpush1.msra.mxu0 %v1603
    %1661 = vmatprep.subr.mxu0 0.0
    %1662 = vmatpush1.msra.mxu0 %v1604
    %1663 = vmatprep.subr.mxu0 0.0
    %1664 = vmatpush1.msra.mxu0 %v1605
    %1665 = vmatprep.subr.mxu0 0.0
    %1666 = vmatpush1.msra.mxu0 %v1606
    %1667 = vmatprep.subr.mxu0 0.0
    %1668 = vmatpush1.msra.mxu0 %v1607
    %1669 = vmatprep.subr.mxu0 0.0
    %1670 = vmatpush1.msra.mxu0 %v1608
    %1671 = vmatprep.subr.mxu0 0.0
    %1672 = vmatpush1.msra.mxu0 %v1609
    %1673 = vmatprep.subr.mxu0 0.0
    %1674 = vmatpush1.msra.mxu0 %v1610
    %1675 = vmatprep.subr.mxu0 0.0
    %1676 = vmatpush1.msra.mxu0 %v1611
    %1677 = vmatprep.subr.mxu0 0.0
    %1678 = vmatpush1.msra.mxu0 %v1612
    %1679 = vmatprep.subr.mxu0 0.0
    %1680 = vmatpush1.msra.mxu0 %v1613
    %1681 = vmatprep.subr.mxu0 0.0
    %1682 = vmatpush1.msra.mxu0 %v1614
    %1683 = vmatprep.subr.mxu0 0.0
    %1684 = vmatpush1.msra.mxu0 %v1615
    %1685 = vmatprep.subr.mxu0 0.0
    %1686 = vmatpush1.msra.mxu0 %v1616
    %1687 = vmatprep.subr.mxu0 0.0
    %1688 = vmatpush1.msra.mxu0 %v1617
    %1689 = vmatprep.subr.mxu0 0.0
    %1690 = vmatpush1.msra.mxu0 %v1618
    %1691 = vmatprep.subr.mxu0 0.0
    %1692 = vmatpush1.msra.mxu0 %v1619
    %1693 = vmatprep.subr.mxu0 0.0
    %1694 = vmatpush1.msra.mxu0 %v1620
    %1695 = vmatprep.subr.mxu0 0.0
    %1696 = vmatpush1.msra.mxu0 %v1621
    %1697 = vmatprep.subr.mxu0 0.0
    %1698 = vmatpush1.msra.mxu0 %v1622
    %1699 = vmatprep.mubr.f32.mxu0 %v1624
    %1700 = vmatmul.mubr.f32.gmra.mrb[0].mxu0 %v1623
    %v1701 = vpop.f32.mrb[0].mxu0
    %v1702 = vadd.f32 %v1629, %v1701
    %v1703 = vpop.f32.mrb[0].mxu0
    %1704 = vmatprep.mubr.f32.mxu0 %v1626
    %1705 = vmatmul.mubr.f32.gmra.mrb[0].mxu0 %v1625
    %v1706 = vpop.f32.mrb[0].mxu0
    %v1707 = vadd.f32 %v1633, %v1706
    %v1708 = vpop.f32.mrb[0].mxu0
    %1709 = vdwg.mxu0
    %v1710 = vxor.u32 %v1702, 2147483648
    %v1711 = vxor.u32 %v1707, 2147483648
    %v1712 = vmul.f32 %v1710, 1.442695
    %v1713 = vpow.pop %v1712
    %v1714 = vmul.f32 %v1711, 1.442695
    %v1715 = vpow.pop %v1714
    %v1716 = vadd.f32 %v1713, 1.0
    %v1717 = vadd.f32 %v1715, 1.0
    %v1718 = vrcp.pop %v1716
    %v1719 = vmul.f32 1.0, %v1718
    %v1720 = vrcp.pop %v1717
    %v1721 = vmul.f32 1.0, %v1720
    %v1722 = vmul.f32 %v1702, %v1719
    %v1723 = vmul.f32 %v1707, %v1721
    %v1724 = vld [vmem:[%s9] sm:$0xff]
    %v1726 = vsel %vm73, %v1724, 0
    %1728 = vmatprep.subr.mxu0 0.0
    %1729 = vmatpush1.msra.mxu0 %v1722
    %1730 = vmatprep.subr.mxu0 0.0
    %1731 = vmatpush1.msra.mxu0 %v1723
    %1732 = vmatprep.subr.mxu0 0.0
    %1733 = vmatpush1.msra.mxu0 0.0
    %1734 = vmatprep.subr.mxu0 0.0
    %1735 = vmatpush1.msra.mxu0 0.0
    %1736 = vmatprep.subr.mxu0 0.0
    %1737 = vmatpush1.msra.mxu0 0.0
    %1738 = vmatprep.subr.mxu0 0.0
    %1739 = vmatpush1.msra.mxu0 0.0
    %1740 = vmatprep.subr.mxu0 0.0
    %1741 = vmatpush1.msra.mxu0 0.0
    %1742 = vmatprep.subr.mxu0 0.0
    %1743 = vmatpush1.msra.mxu0 0.0
    %1744 = vmatprep.subr.mxu0 0.0
    %1745 = vmatpush1.msra.mxu0 0.0
    %1746 = vmatprep.subr.mxu0 0.0
    %1747 = vmatpush1.msra.mxu0 0.0
    %1748 = vmatprep.subr.mxu0 0.0
    %1749 = vmatpush1.msra.mxu0 0.0
    %1750 = vmatprep.subr.mxu0 0.0
    %1751 = vmatpush1.msra.mxu0 0.0
    %1752 = vmatprep.subr.mxu0 0.0
    %1753 = vmatpush1.msra.mxu0 0.0
    %1754 = vmatprep.subr.mxu0 0.0
    %1755 = vmatpush1.msra.mxu0 0.0
    %1756 = vmatprep.subr.mxu0 0.0
    %1757 = vmatpush1.msra.mxu0 0.0
    %1758 = vmatprep.subr.mxu0 0.0
    %1759 = vmatpush1.msra.mxu0 0.0
    %1760 = vmatprep.subr.mxu0 0.0
    %1761 = vmatpush1.msra.mxu0 0.0
    %1762 = vmatprep.subr.mxu0 0.0
    %1763 = vmatpush1.msra.mxu0 0.0
    %1764 = vmatprep.subr.mxu0 0.0
    %1765 = vmatpush1.msra.mxu0 0.0
    %1766 = vmatprep.subr.mxu0 0.0
    %1767 = vmatpush1.msra.mxu0 0.0
    %1768 = vmatprep.subr.mxu0 0.0
    %1769 = vmatpush1.msra.mxu0 0.0
    %1770 = vmatprep.subr.mxu0 0.0
    %1771 = vmatpush1.msra.mxu0 0.0
    %1772 = vmatprep.subr.mxu0 0.0
    %1773 = vmatpush1.msra.mxu0 0.0
    %1774 = vmatprep.subr.mxu0 0.0
    %1775 = vmatpush1.msra.mxu0 0.0
    %1776 = vmatprep.subr.mxu0 0.0
    %1777 = vmatpush1.msra.mxu0 0.0
    %1778 = vmatprep.subr.mxu0 0.0
    %1779 = vmatpush1.msra.mxu0 0.0
    %1780 = vmatprep.subr.mxu0 0.0
    %1781 = vmatpush1.msra.mxu0 0.0
    %1782 = vmatprep.subr.mxu0 0.0
    %1783 = vmatpush1.msra.mxu0 0.0
    %1784 = vmatprep.subr.mxu0 0.0
    %1785 = vmatpush1.msra.mxu0 0.0
    %1786 = vmatprep.subr.mxu0 0.0
    %1787 = vmatpush1.msra.mxu0 0.0
    %1788 = vmatprep.subr.mxu0 0.0
    %1789 = vmatpush1.msra.mxu0 0.0
    %1790 = vmatprep.subr.mxu0 0.0
    %1791 = vmatpush1.msra.mxu0 0.0
    %1792 = vmatprep.mubr.f32.mxu0 0.0
    %1793 = vmatmul.mubr.f32.gmra.mrb[0].mxu0 %v1726
    %v1794 = vpop.f32.mrb[0].mxu0
    %v1795 = vadd.f32 0.0, %v1794
    %v1796 = vpop.f32.mrb[0].mxu0
    %1797 = vdwg.mxu0
    %1799 = vset.pattern.permute.xlu0 2
    %1800 = vperm.xlu0 %1799, %v38
    %v1801 = vpop.permute.xlu0 %1800
    %v1803 = vadd.f32 %v1795, %v1801
    %1804 = vst [vmem:[#allocation2] sm:$0x1] %v1803
    // Predicated region
    $region42: #{tpu_custom_call.1} parent=1 // pred_check
      _
    $region43: #{tpu_custom_call.1} parent=1 // pred_check_branch
      %1806 = sbr.rel (0) target = $region45
    $region44: #{tpu_custom_call.1} parent=1 // pred_region
      %s1808 = ssub.s32 16, 16
      %1809 = vsyncadd [#allocation3], %s1808
      %s1811 = sshll.u32 [#allocation2], 4
      %s1812 = int_to_ptr.vmem [resolvable:$true] %s1811
      %1814 = dma.vmem_to_hbm [thread:$0]  %s1812, 16, %s10, [#allocation3]
    $region45: #{tpu_custom_call.1} parent=1 // pred_fallthru
      _
    // Predicated region
    $region46: #{tpu_custom_call.1} parent=1 // pred_check
      _
    $region47: #{tpu_custom_call.1} parent=1 // pred_check_branch
      %1816 = sbr.rel (0) target = $region49
    $region48: #{tpu_custom_call.1} parent=1 // pred_region
      %1817 = dma.done [#allocation3], 16
    $region49: #{tpu_custom_call.1} parent=1 // pred_fallthru
      _
    %1818 = vsyncpa [#allocation3], 1

</llo_original>
